<compile_context>
chip_gen: v5e
topology: v5e:2x2
jax: 0.10.0
libtpu: 0.0.40
codegen_flags: <defaults>
</compile_context>

<pallas_src>
import functools

import jax
import jax.numpy as jnp
from jax.experimental import pallas as pl
from jax.experimental.pallas import tpu as pltpu


def _round_up(a, b):
    return (a + b - 1) // b * b


def _amp_kernel(G, P, Pout, C, eps,
                x_ref, q_ref, wpe_ref, bpe_ref, r_ref, wot_ref, bo_ref, o_ref):
    # x_ref  : (TQ, G*P*C)        lane-dense sampled features
    # q_ref  : (TQ, Dq)           queries
    # wpe_ref: (Dq, Pout*G*P*C)   expanded parameter_generator weight (S broadcast over C)
    # bpe_ref: (1,  Pout*G*P*C)   expanded parameter_generator bias
    # r_ref  : (Pout*G*P*C, G*Pout*C)  constant 0/1 reduction matrix (sum over P)
    # wot_ref: (G*Pout*C, Dq)     out_proj weight, pre-transposed
    # bo_ref : (1, Dq)            out_proj bias
    q = q_ref[...]                                        # (TQ, Dq)
    xf = x_ref[...]                                       # (TQ, G*P*C)

    # 1) mixing coefficients, already laid out as (o, g, p, c) and broadcast over c
    params = jnp.dot(q, wpe_ref[...],
                     preferred_element_type=jnp.float32) + bpe_ref[...]   # (TQ, Pout*G*P*C)

    # 2) adaptive spatial mixing: full-lane elementwise products, then sum over P on the MXU
    xrep = jnp.concatenate([xf] * Pout, axis=-1)          # (TQ, Pout*G*P*C)  (vreg-aligned copies)
    prod = params * xrep                                  # S[n,g,o,p] * x[n,g,p,c]
    mixed = jnp.dot(prod, r_ref[...],
                    preferred_element_type=jnp.float32)   # (TQ, G*Pout*C), order (g, o, c)

    # 3) LayerNorm over each group's (Pout, C) block (fused one-pass stats), then ReLU
    gw = Pout * C
    inv = 1.0 / float(gw)
    pieces = []
    for g in range(G):
        h = mixed[:, g * gw:(g + 1) * gw]                 # (TQ, Pout*C)
        s1 = jnp.sum(h, axis=-1, keepdims=True)
        s2 = jnp.sum(h * h, axis=-1, keepdims=True)
        mean = s1 * inv
        var = s2 * inv - mean * mean
        rstd = jax.lax.rsqrt(var + eps)
        pieces.append((h - mean) * rstd)
    normed = jnp.maximum(jnp.concatenate(pieces, axis=-1), 0.0)   # (TQ, G*Pout*C)

    # 4) out_proj back to query dim + residual
    out = jnp.dot(normed, wot_ref[...],
                  preferred_element_type=jnp.float32) + bo_ref[...]       # (TQ, Dq)
    o_ref[...] = q + out


def adaptive_mixing_point_only(x, query, wp, bp, wo, bo,
                               n_groups, in_points, out_points,
                               tile_q=256, eps=1e-5):
    """x: (B, Q, G, P, C), query: (B, Q, Dq). Returns (B, Q, Dq)."""
    B, Q, G, P, C = x.shape
    assert G == n_groups and P == in_points
    Dq = query.shape[-1]
    Pout = out_points
    GPC = G * P * C                  # lane-dense x width (=256 for the default config)
    M = G * Pout * C                 # mixed/out_proj feature width
    E = Pout * GPC                   # expanded parameter width
    N = B * Q

    # token tile: as large as requested, multiple of 8, pad ragged N with zeros
    tile = _round_up(min(tile_q, _round_up(N, 8)), 8)
    Np = _round_up(N, tile)

    xf = x.reshape(N, GPC)
    qf = query.reshape(N, Dq)
    if Np != N:
        pad = Np - N
        xf = jnp.pad(xf, ((0, pad), (0, 0)))
        qf = jnp.pad(qf, ((0, pad), (0, 0)))

    # --- host/XLA-side one-time weight transforms -------------------------------------------
    # expanded parameter_generator weight: wpe[d, o*GPC + g*P*C + p*C + c] = wp[g*Pout*P+o*P+p, d]
    w4 = wp.reshape(G, Pout, P, Dq)
    w5 = jnp.transpose(w4, (1, 0, 2, 3))                                   # (Pout, G, P, Dq)
    wpe = jnp.broadcast_to(w5[:, :, :, None, :],
                           (Pout, G, P, C, Dq)).reshape(E, Dq).T           # (Dq, E)
    b5 = jnp.transpose(bp.reshape(G, Pout, P), (1, 0, 2))                  # (Pout, G, P)
    bpe = jnp.broadcast_to(b5[:, :, :, None], (Pout, G, P, C)).reshape(1, E)

    # constant 0/1 reduction matrix: sums products over P, placing output in (g, o, c) order
    rows = jnp.arange(E)
    o_r = rows // GPC
    rem = rows % GPC
    g_r = rem // (P * C)
    c_r = (rem % (P * C)) % C
    cols = jnp.arange(M)
    g_c = cols // (Pout * C)
    o_c = (cols % (Pout * C)) // C
    c_c = (cols % (Pout * C)) % C
    R = ((o_r[:, None] == o_c[None, :])
         & (g_r[:, None] == g_c[None, :])
         & (c_r[:, None] == c_c[None, :])).astype(jnp.float32)             # (E, M)

    woT = wo.T                                                             # (M, Dq)
    bo2 = bo.reshape(1, Dq)
    # -----------------------------------------------------------------------------------------

    kernel = functools.partial(_amp_kernel, G, P, Pout, C, eps)

    out = pl.pallas_call(
        kernel,
        out_shape=jax.ShapeDtypeStruct((Np, Dq), jnp.float32),
        grid_spec=pltpu.PrefetchScalarGridSpec(
            num_scalar_prefetch=0,
            grid=(Np // tile,),
            in_specs=[
                pl.BlockSpec((tile, GPC), lambda i: (i, 0)),
                pl.BlockSpec((tile, Dq), lambda i: (i, 0)),
                pl.BlockSpec((Dq, E), lambda i: (0, 0)),
                pl.BlockSpec((1, E), lambda i: (0, 0)),
                pl.BlockSpec((E, M), lambda i: (0, 0)),
                pl.BlockSpec((M, Dq), lambda i: (0, 0)),
                pl.BlockSpec((1, Dq), lambda i: (0, 0)),
            ],
            out_specs=pl.BlockSpec((tile, Dq), lambda i: (i, 0)),
        ),
        compiler_params=pltpu.CompilerParams(
            dimension_semantics=("parallel",),
            vmem_limit_bytes=48 * 1024 * 1024),
    )(xf, qf, wpe, bpe, R, woT, bo2)

    return out[:N].reshape(B, Q, Dq)


def _reference(x, query, wp, bp, wo, bo, n_groups, in_points, out_points, eps=1e-5):
    """Plain-JAX reference mirroring the PyTorch inner_forward."""
    B, Q, G, P, C = x.shape
    params = query @ wp.T + bp                              # (B, Q, G*Pout*P)
    S = params.reshape(B * Q, G, out_points, in_points)
    out = x.reshape(B * Q, G, P, C)
    out = jnp.einsum('bgop,bgpc->bgoc', S, out)
    m = jnp.mean(out, axis=(-2, -1), keepdims=True)
    v = jnp.mean((out - m) ** 2, axis=(-2, -1), keepdims=True)
    out = (out - m) / jnp.sqrt(v + eps)
    out = jnp.maximum(out, 0.0)
    out = out.reshape(B, Q, -1)
    out = out @ wo.T + bo
    return query + out


def _run_case(key, B, Q, n_groups, in_points, out_points, query_dim, eff_in_dim):
    k_x, k_q, k_wp, k_bp, k_wo, k_bo = jax.random.split(key, 6)
    x = jax.random.normal(k_x, (B, Q, n_groups, in_points, eff_in_dim), dtype=jnp.float32)
    query = jax.random.normal(k_q, (B, Q, query_dim), dtype=jnp.float32)
    wp = 0.05 * jax.random.normal(k_wp, (n_groups * out_points * in_points, query_dim), jnp.float32)
    bp = 0.05 * jax.random.normal(k_bp, (n_groups * out_points * in_points,), jnp.float32)
    wo = 0.05 * jax.random.normal(k_wo, (query_dim, n_groups * out_points * eff_in_dim), jnp.float32)
    bo = 0.05 * jax.random.normal(k_bo, (query_dim,), jnp.float32)

    out = adaptive_mixing_point_only(
        x, query, wp, bp, wo, bo,
        n_groups=n_groups, in_points=in_points, out_points=out_points)
    out = jax.block_until_ready(out)

    ref = _reference(x, query, wp, bp, wo, bo, n_groups, in_points, out_points)
    assert out.shape == (B, Q, query_dim)
    assert jnp.allclose(out, ref, atol=2e-4, rtol=2e-4), "mismatch vs reference"


if __name__ == "__main__":
    # Module hyper-params (out_dim/out_points/query_dim default to in_dim/in_points/in_dim)
    in_dim = 32
    n_groups = 2
    in_points = 8
    out_points = 8
    query_dim = 32
    eff_in_dim = in_dim // n_groups          # 16

    key = jax.random.PRNGKey(0)
    k1, k2 = jax.random.split(key)

    # small case (N < tile): exercises the shrink-to-N tile path
    _run_case(k1, B=2, Q=8, n_groups=n_groups, in_points=in_points,
              out_points=out_points, query_dim=query_dim, eff_in_dim=eff_in_dim)
    # multi-tile case with ragged N: exercises 256-token tiles + zero padding
    _run_case(k2, B=2, Q=300, n_groups=n_groups, in_points=in_points,
              out_points=out_points, query_dim=query_dim, eff_in_dim=eff_in_dim)

    print("KERNEL_OK")
</pallas_src>

<mosaic_0001>
module attributes {stable_mosaic.version = 11 : i64} {
  func.func @_amp_kernel(%arg0: i32, %arg1: memref<16x256xf32, #tpu.memory_space<vmem>>, %arg2: memref<16x32xf32, #tpu.memory_space<vmem>>, %arg3: memref<32x2048xf32, #tpu.memory_space<vmem>>, %arg4: memref<1x2048xf32, #tpu.memory_space<vmem>>, %arg5: memref<2048x256xf32, #tpu.memory_space<vmem>>, %arg6: memref<256x32xf32, #tpu.memory_space<vmem>>, %arg7: memref<1x32xf32, #tpu.memory_space<vmem>>, %arg8: memref<16x32xf32, #tpu.memory_space<vmem>>) attributes {dimension_semantics = [#tpu.dimension_semantics<parallel>], iteration_bounds = array<i64: 1>, scalar_prefetch = 0 : i64, scratch_operands = 0 : i64, tpu.core_type = #tpu.core_type<tc>, window_params = [{transform_indices = @transform_0, window_bounds = array<i64: 16, 256>}, {transform_indices = @transform_1, window_bounds = array<i64: 16, 32>}, {pipeline_mode = #tpu.pipeline_mode<synchronous>, transform_indices = @transform_2, window_bounds = array<i64: 32, 2048>}, {pipeline_mode = #tpu.pipeline_mode<synchronous>, transform_indices = @transform_3, window_bounds = array<i64: 1, 2048>}, {pipeline_mode = #tpu.pipeline_mode<synchronous>, transform_indices = @transform_4, window_bounds = array<i64: 2048, 256>}, {pipeline_mode = #tpu.pipeline_mode<synchronous>, transform_indices = @transform_5, window_bounds = array<i64: 256, 32>}, {pipeline_mode = #tpu.pipeline_mode<synchronous>, transform_indices = @transform_6, window_bounds = array<i64: 1, 32>}, {transform_indices = @transform_7, window_bounds = array<i64: 16, 32>}]} {
    %c0 = arith.constant 0 : index
    %c0_0 = arith.constant 0 : index
    %0 = vector.load %arg2[%c0, %c0_0] : memref<16x32xf32, #tpu.memory_space<vmem>>, vector<16x32xf32>
    %c0_1 = arith.constant 0 : index
    %c0_2 = arith.constant 0 : index
    %1 = vector.load %arg1[%c0_1, %c0_2] : memref<16x256xf32, #tpu.memory_space<vmem>>, vector<16x256xf32>
    %c0_3 = arith.constant 0 : index
    %c0_4 = arith.constant 0 : index
    %2 = vector.load %arg3[%c0_3, %c0_4] : memref<32x2048xf32, #tpu.memory_space<vmem>>, vector<32x2048xf32>
    %cst = arith.constant dense<0.000000e+00> : vector<16x2048xf32>
    %3 = tpu.matmul %0, %2, %cst {dimension_numbers = #tpu.dot_dimension_numbers<[1], [0], [0], [1], [0, 0, 1, 1], [], []>} : vector<16x32xf32>, vector<32x2048xf32>, vector<16x2048xf32> -> vector<16x2048xf32>
    %c0_5 = arith.constant 0 : index
    %c0_6 = arith.constant 0 : index
    %4 = vector.load %arg4[%c0_5, %c0_6] : memref<1x2048xf32, #tpu.memory_space<vmem>>, vector<1x2048xf32>
    %5 = vector.broadcast %4 : vector<1x2048xf32> to vector<16x2048xf32>
    %6 = arith.addf %3, %5 : vector<16x2048xf32>
    %7 = tpu.concatenate %1, %1, %1, %1, %1, %1, %1, %1 in 1 : vector<16x256xf32>, vector<16x256xf32>, vector<16x256xf32>, vector<16x256xf32>, vector<16x256xf32>, vector<16x256xf32>, vector<16x256xf32>, vector<16x256xf32> -> vector<16x2048xf32>
    %8 = arith.mulf %6, %7 : vector<16x2048xf32>
    %c0_7 = arith.constant 0 : index
    %c0_8 = arith.constant 0 : index
    %9 = vector.load %arg5[%c0_7, %c0_8] : memref<2048x256xf32, #tpu.memory_space<vmem>>, vector<2048x256xf32>
    %cst_9 = arith.constant dense<0.000000e+00> : vector<16x256xf32>
    %10 = tpu.matmul %8, %9, %cst_9 {dimension_numbers = #tpu.dot_dimension_numbers<[1], [0], [0], [1], [0, 0, 1, 1], [], []>} : vector<16x2048xf32>, vector<2048x256xf32>, vector<16x256xf32> -> vector<16x256xf32>
    %11 = vector.extract_strided_slice %10 {offsets = [0, 0], sizes = [16, 128], strides = [1, 1]} : vector<16x256xf32> to vector<16x128xf32>
    %cst_10 = arith.constant dense<0.000000e+00> : vector<16xf32>
    %12 = vector.multi_reduction <add>, %11, %cst_10 [1] : vector<16x128xf32> to vector<16xf32>
    %13 = vector.shape_cast %12 : vector<16xf32> to vector<16x1xf32>
    %14 = arith.mulf %11, %11 : vector<16x128xf32>
    %cst_11 = arith.constant dense<0.000000e+00> : vector<16xf32>
    %15 = vector.multi_reduction <add>, %14, %cst_11 [1] : vector<16x128xf32> to vector<16xf32>
    %16 = vector.shape_cast %15 : vector<16xf32> to vector<16x1xf32>
    %cst_12 = arith.constant 7.812500e-03 : f32
    %17 = vector.broadcast %cst_12 : f32 to vector<16x1xf32>
    %18 = arith.mulf %13, %17 : vector<16x1xf32>
    %cst_13 = arith.constant 7.812500e-03 : f32
    %19 = vector.broadcast %cst_13 : f32 to vector<16x1xf32>
    %20 = arith.mulf %16, %19 : vector<16x1xf32>
    %21 = arith.mulf %18, %18 : vector<16x1xf32>
    %22 = arith.subf %20, %21 : vector<16x1xf32>
    %cst_14 = arith.constant 9.99999974E-6 : f32
    %23 = vector.broadcast %cst_14 : f32 to vector<16x1xf32>
    %24 = arith.addf %22, %23 : vector<16x1xf32>
    %25 = math.rsqrt %24 : vector<16x1xf32>
    %26 = vector.broadcast %18 : vector<16x1xf32> to vector<16x128xf32>
    %27 = arith.subf %11, %26 : vector<16x128xf32>
    %28 = vector.broadcast %25 : vector<16x1xf32> to vector<16x128xf32>
    %29 = arith.mulf %27, %28 : vector<16x128xf32>
    %30 = vector.extract_strided_slice %10 {offsets = [0, 128], sizes = [16, 128], strides = [1, 1]} : vector<16x256xf32> to vector<16x128xf32>
    %cst_15 = arith.constant dense<0.000000e+00> : vector<16xf32>
    %31 = vector.multi_reduction <add>, %30, %cst_15 [1] : vector<16x128xf32> to vector<16xf32>
    %32 = vector.shape_cast %31 : vector<16xf32> to vector<16x1xf32>
    %33 = arith.mulf %30, %30 : vector<16x128xf32>
    %cst_16 = arith.constant dense<0.000000e+00> : vector<16xf32>
    %34 = vector.multi_reduction <add>, %33, %cst_16 [1] : vector<16x128xf32> to vector<16xf32>
    %35 = vector.shape_cast %34 : vector<16xf32> to vector<16x1xf32>
    %cst_17 = arith.constant 7.812500e-03 : f32
    %36 = vector.broadcast %cst_17 : f32 to vector<16x1xf32>
    %37 = arith.mulf %32, %36 : vector<16x1xf32>
    %cst_18 = arith.constant 7.812500e-03 : f32
    %38 = vector.broadcast %cst_18 : f32 to vector<16x1xf32>
    %39 = arith.mulf %35, %38 : vector<16x1xf32>
    %40 = arith.mulf %37, %37 : vector<16x1xf32>
    %41 = arith.subf %39, %40 : vector<16x1xf32>
    %cst_19 = arith.constant 9.99999974E-6 : f32
    %42 = vector.broadcast %cst_19 : f32 to vector<16x1xf32>
    %43 = arith.addf %41, %42 : vector<16x1xf32>
    %44 = math.rsqrt %43 : vector<16x1xf32>
    %45 = vector.broadcast %37 : vector<16x1xf32> to vector<16x128xf32>
    %46 = arith.subf %30, %45 : vector<16x128xf32>
    %47 = vector.broadcast %44 : vector<16x1xf32> to vector<16x128xf32>
    %48 = arith.mulf %46, %47 : vector<16x128xf32>
    %49 = tpu.concatenate %29, %48 in 1 : vector<16x128xf32>, vector<16x128xf32> -> vector<16x256xf32>
    %cst_20 = arith.constant 0.000000e+00 : f32
    %50 = vector.broadcast %cst_20 : f32 to vector<16x256xf32>
    %51 = arith.maximumf %49, %50 : vector<16x256xf32>
    %c0_21 = arith.constant 0 : index
    %c0_22 = arith.constant 0 : index
    %52 = vector.load %arg6[%c0_21, %c0_22] : memref<256x32xf32, #tpu.memory_space<vmem>>, vector<256x32xf32>
    %cst_23 = arith.constant dense<0.000000e+00> : vector<16x32xf32>
    %53 = tpu.matmul %51, %52, %cst_23 {dimension_numbers = #tpu.dot_dimension_numbers<[1], [0], [0], [1], [0, 0, 1, 1], [], []>} : vector<16x256xf32>, vector<256x32xf32>, vector<16x32xf32> -> vector<16x32xf32>
    %c0_24 = arith.constant 0 : index
    %c0_25 = arith.constant 0 : index
    %54 = vector.load %arg7[%c0_24, %c0_25] : memref<1x32xf32, #tpu.memory_space<vmem>>, vector<1x32xf32>
    %55 = vector.broadcast %54 : vector<1x32xf32> to vector<16x32xf32>
    %56 = arith.addf %53, %55 : vector<16x32xf32>
    %57 = arith.addf %0, %56 : vector<16x32xf32>
    %c0_26 = arith.constant 0 : index
    %c0_27 = arith.constant 0 : index
    %58 = vector.load %arg8[%c0_26, %c0_27] : memref<16x32xf32, #tpu.memory_space<vmem>>, vector<16x32xf32>
    tpu.vector_store %arg8[%c0_26, %c0_27], %57 {strides = array<i32>} : memref<16x32xf32, #tpu.memory_space<vmem>>, vector<16x32xf32>,
    return
  }
  func.func @transform_0(%arg0: i32) -> (i32, i32) {
    %c0_i32 = arith.constant 0 : i32
    %c0_i32_0 = arith.constant 0 : i32
    return %arg0, %c0_i32 : i32, i32
  }
  func.func @transform_1(%arg0: i32) -> (i32, i32) {
    %c0_i32 = arith.constant 0 : i32
    %c0_i32_0 = arith.constant 0 : i32
    return %arg0, %c0_i32 : i32, i32
  }
  func.func @transform_2(%arg0: i32) -> (i32, i32) {
    %c0_i32 = arith.constant 0 : i32
    %c0_i32_0 = arith.constant 0 : i32
    %c0_i32_1 = arith.constant 0 : i32
    return %c0_i32, %c0_i32_0 : i32, i32
  }
  func.func @transform_3(%arg0: i32) -> (i32, i32) {
    %c0_i32 = arith.constant 0 : i32
    %c0_i32_0 = arith.constant 0 : i32
    %c0_i32_1 = arith.constant 0 : i32
    return %c0_i32, %c0_i32_0 : i32, i32
  }
  func.func @transform_4(%arg0: i32) -> (i32, i32) {
    %c0_i32 = arith.constant 0 : i32
    %c0_i32_0 = arith.constant 0 : i32
    %c0_i32_1 = arith.constant 0 : i32
    return %c0_i32, %c0_i32_0 : i32, i32
  }
  func.func @transform_5(%arg0: i32) -> (i32, i32) {
    %c0_i32 = arith.constant 0 : i32
    %c0_i32_0 = arith.constant 0 : i32
    %c0_i32_1 = arith.constant 0 : i32
    return %c0_i32, %c0_i32_0 : i32, i32
  }
  func.func @transform_6(%arg0: i32) -> (i32, i32) {
    %c0_i32 = arith.constant 0 : i32
    %c0_i32_0 = arith.constant 0 : i32
    %c0_i32_1 = arith.constant 0 : i32
    return %c0_i32, %c0_i32_0 : i32, i32
  }
  func.func @transform_7(%arg0: i32) -> (i32, i32) {
    %c0_i32 = arith.constant 0 : i32
    %c0_i32_0 = arith.constant 0 : i32
    return %arg0, %c0_i32 : i32, i32
  }
}

</mosaic_0001>

<llo_original>
// kernel: tpu_custom_call.1
$region0: #{tpu_custom_call.1}
  #allocation0 [shape = 'u32[]', space=smem, size = 0x4, offset = 0x4, fixed_abs, tag = 'smem constant byte address 0x4 - core index']
  #allocation1 [shape = 'u32[72,128]{1,0:T(1,128)}', space=vmem, size = 0x9000, scoped, tag = 'internal scratch']
  %s0 = inlined_call_operand.hbm [shape: f32[16,256], index: 0, kind: input, shape index: {}]
  %s1 = inlined_call_operand.hbm [shape: f32[16,32], index: 1, kind: input, shape index: {}]
  %s2 = inlined_call_operand.hbm [shape: f32[32,2048], index: 2, kind: input, shape index: {}]
  %s3 = inlined_call_operand.hbm [shape: f32[1,2048], index: 3, kind: input, shape index: {}]
  %s4 = inlined_call_operand.hbm [shape: f32[2048,256], index: 4, kind: input, shape index: {}]
  %s5 = inlined_call_operand.vmem [shape: f32[256,32], index: 5, kind: input, shape index: {}]
  %s6 = inlined_call_operand.hbm [shape: f32[1,32], index: 6, kind: input, shape index: {}]
  %s7 = inlined_call_operand.hbm [shape: f32[16,32], index: 7, kind: output, shape index: {}]
  %s8 = sld [smem:[#allocation0]]
  $region62: #{tpu_custom_call.1} parent=0
    _
  %s10 = ssub.s32 1, %s8
  %s11 = scalar_select 0, %s10, %s8
  $region1: #{tpu_custom_call.1} parent=0
    #allocation2 [shape = 'u8[16384]{0}', space=vmem, size = 0x4000, scoped, tag = 'input window, operand 0, single buffered']
    #allocation3 [shape = 's32[1]{0}', space=sflag, size = 0x4, scoped, tag = 'scoped memory for tpu_custom_call.1']
    #allocation4 [shape = 's32[1]{0}', space=sflag, size = 0x4, scoped, tag = 'scoped memory for tpu_custom_call.1']
    #allocation5 [shape = 'u8[8192]{0}', space=vmem, size = 0x2000, scoped, tag = 'input window, operand 1, single buffered']
    #allocation6 [shape = 's32[1]{0}', space=sflag, size = 0x4, scoped, tag = 'scoped memory for tpu_custom_call.1']
    #allocation7 [shape = 'u8[262144]{0}', space=vmem, size = 0x40000, scoped, tag = 'input window, operand 2, single buffered']
    #allocation8 [shape = 'u8[8192]{0}', space=vmem, size = 0x2000, scoped, tag = 'input window, operand 3, single buffered']
    #allocation9 [shape = 's32[1]{0}', space=sflag, size = 0x4, scoped, tag = 'scoped memory for tpu_custom_call.1']
    #allocation10 [shape = 'u8[2097152]{0}', space=vmem, size = 0x200000, scoped, tag = 'input window, operand 4, single buffered']
    #allocation11 [shape = 'u8[512]{0}', space=vmem, size = 0x400, scoped, tag = 'input window, operand 6, single buffered']
    #allocation12 [shape = 's32[1]{0}', space=sflag, size = 0x4, scoped, tag = 'scoped memory for tpu_custom_call.1']
    #allocation13 [shape = 'u8[8192]{0}', space=vmem, size = 0x2000, scoped, tag = 'output window, operand 0, single buffered']
    %12 = vsyncpa [#allocation3], 0
    %13 = vsyncpa [#allocation6], 0
    %14 = vsyncpa [#allocation9], 0
    %15 = vsyncpa [#allocation12], 0
    %16 = vsyncpa [#allocation4], 0
    // Predicated region
    $region2: #{tpu_custom_call.1} parent=1 // pred_check
      _
    $region3: #{tpu_custom_call.1} parent=1 // pred_check_branch
      %18 = sbr.rel (0) target = $region5
    $region4: #{tpu_custom_call.1} parent=1 // pred_region
      %20 = vsyncadd [#allocation3], 0
      %s21 = sshll.u32 %s0, 4
      %s22 = int_to_ptr.hbm [resolvable:$true] %s21
      %s23 = sshll.u32 [#allocation2], 4
      %s24 = int_to_ptr.vmem [resolvable:$true] %s23
      %29 = dma.hbm_to_vmem [thread:$0]  %s22, 512, %s24, [#allocation3], 256, 256, 16
    $region5: #{tpu_custom_call.1} parent=1 // pred_fallthru
      _
    // Predicated region
    $region6: #{tpu_custom_call.1} parent=1 // pred_check
      _
    $region7: #{tpu_custom_call.1} parent=1 // pred_check_branch
      %31 = sbr.rel (0) target = $region9
    $region8: #{tpu_custom_call.1} parent=1 // pred_region
      %33 = vsyncadd [#allocation6], 0
      %s34 = sshll.u32 %s1, 4
      %s35 = int_to_ptr.hbm [resolvable:$true] %s34
      %s36 = sshll.u32 [#allocation5], 4
      %s37 = int_to_ptr.vmem [resolvable:$true] %s36
      %42 = dma.hbm_to_vmem [thread:$0]  %s35, 256, %s37, [#allocation6], 128, 128, 8
    $region9: #{tpu_custom_call.1} parent=1 // pred_fallthru
      _
    // Predicated region
    $region10: #{tpu_custom_call.1} parent=1 // pred_check
      _
    $region11: #{tpu_custom_call.1} parent=1 // pred_check_branch
      %44 = sbr.rel (0) target = $region13
    $region12: #{tpu_custom_call.1} parent=1 // pred_region
      %46 = vsyncadd [#allocation6], 0
      %s47 = sshll.u32 %s2, 4
      %s48 = int_to_ptr.hbm [resolvable:$true] %s47
      %s49 = sshll.u32 [#allocation7], 4
      %s50 = int_to_ptr.vmem [resolvable:$true] %s49
      %55 = dma.hbm_to_vmem [thread:$0]  %s48, 8192, %s50, [#allocation6], 2048, 2048, 128
    $region13: #{tpu_custom_call.1} parent=1 // pred_fallthru
      _
    // Predicated region
    $region14: #{tpu_custom_call.1} parent=1 // pred_check
      _
    $region15: #{tpu_custom_call.1} parent=1 // pred_check_branch
      %57 = sbr.rel (0) target = $region17
    $region16: #{tpu_custom_call.1} parent=1 // pred_region
      %59 = vsyncadd [#allocation9], 0
      %s61 = sshll.u32 %s3, 4
      %s62 = int_to_ptr.hbm [resolvable:$true] %s61
      %s63 = sshll.u32 [#allocation8], 4
      %s64 = int_to_ptr.vmem [resolvable:$true] %s63
      %66 = dma.hbm_to_vmem [thread:$0]  %s62, 256, %s64, [#allocation9]
    $region17: #{tpu_custom_call.1} parent=1 // pred_fallthru
      _
    // Predicated region
    $region18: #{tpu_custom_call.1} parent=1 // pred_check
      _
    $region19: #{tpu_custom_call.1} parent=1 // pred_check_branch
      %68 = sbr.rel (0) target = $region21
    $region20: #{tpu_custom_call.1} parent=1 // pred_region
      %70 = vsyncadd [#allocation9], 0
      %s71 = sshll.u32 %s4, 4
      %s72 = int_to_ptr.hbm [resolvable:$true] %s71
      %s73 = sshll.u32 [#allocation10], 4
      %s74 = int_to_ptr.vmem [resolvable:$true] %s73
      %79 = dma.hbm_to_vmem [thread:$0]  %s72, 65536, %s74, [#allocation9], 256, 256, 16
    $region21: #{tpu_custom_call.1} parent=1 // pred_fallthru
      _
    // Predicated region
    $region22: #{tpu_custom_call.1} parent=1 // pred_check
      _
    $region23: #{tpu_custom_call.1} parent=1 // pred_check_branch
      %81 = sbr.rel (0) target = $region25
    $region24: #{tpu_custom_call.1} parent=1 // pred_region
      _
    $region25: #{tpu_custom_call.1} parent=1 // pred_fallthru
      _
    // Predicated region
    $region26: #{tpu_custom_call.1} parent=1 // pred_check
      _
    $region27: #{tpu_custom_call.1} parent=1 // pred_check_branch
      %83 = sbr.rel (0) target = $region29
    $region28: #{tpu_custom_call.1} parent=1 // pred_region
      %85 = vsyncadd [#allocation12], 0
      %s87 = sshll.u32 %s6, 4
      %s88 = int_to_ptr.hbm [resolvable:$true] %s87
      %s89 = sshll.u32 [#allocation11], 4
      %s90 = int_to_ptr.vmem [resolvable:$true] %s89
      %92 = dma.hbm_to_vmem [thread:$0]  %s88, 16, %s90, [#allocation12]
    $region29: #{tpu_custom_call.1} parent=1 // pred_fallthru
      _
    // Predicated region
    $region30: #{tpu_custom_call.1} parent=1 // pred_check
      _
    $region31: #{tpu_custom_call.1} parent=1 // pred_check_branch
      %94 = sbr.rel (0) target = $region33
    $region32: #{tpu_custom_call.1} parent=1 // pred_region
      %96 = dma.done [#allocation3], 512
    $region33: #{tpu_custom_call.1} parent=1 // pred_fallthru
      _
    // Predicated region
    $region34: #{tpu_custom_call.1} parent=1 // pred_check
      _
    $region35: #{tpu_custom_call.1} parent=1 // pred_check_branch
      %98 = sbr.rel (0) target = $region37
    $region36: #{tpu_custom_call.1} parent=1 // pred_region
      %100 = dma.done [#allocation6], 256
    $region37: #{tpu_custom_call.1} parent=1 // pred_fallthru
      _
    // Predicated region
    $region38: #{tpu_custom_call.1} parent=1 // pred_check
      _
    $region39: #{tpu_custom_call.1} parent=1 // pred_check_branch
      %102 = sbr.rel (0) target = $region41
    $region40: #{tpu_custom_call.1} parent=1 // pred_region
      %104 = dma.done [#allocation6], 8192
    $region41: #{tpu_custom_call.1} parent=1 // pred_fallthru
      _
    // Predicated region
    $region42: #{tpu_custom_call.1} parent=1 // pred_check
      _
    $region43: #{tpu_custom_call.1} parent=1 // pred_check_branch
      %106 = sbr.rel (0) target = $region45
    $region44: #{tpu_custom_call.1} parent=1 // pred_region
      %108 = dma.done [#allocation9], 256
    $region45: #{tpu_custom_call.1} parent=1 // pred_fallthru
      _
    // Predicated region
    $region46: #{tpu_custom_call.1} parent=1 // pred_check
      _
    $region47: #{tpu_custom_call.1} parent=1 // pred_check_branch
      %110 = sbr.rel (0) target = $region49
    $region48: #{tpu_custom_call.1} parent=1 // pred_region
      %112 = dma.done [#allocation9], 65536
    $region49: #{tpu_custom_call.1} parent=1 // pred_fallthru
      _
    // Predicated region
    $region50: #{tpu_custom_call.1} parent=1 // pred_check
      _
    $region51: #{tpu_custom_call.1} parent=1 // pred_check_branch
      %114 = sbr.rel (0) target = $region53
    $region52: #{tpu_custom_call.1} parent=1 // pred_region
      %116 = dma.done [#allocation12], 16
    $region53: #{tpu_custom_call.1} parent=1 // pred_fallthru
      _
    %v117 = vld [vmem:[#allocation5] sm:$0xff]
    %v118 = vld [vmem:[#allocation5 + $0x8] sm:$0xff]
    %v119 = vld [vmem:[#allocation2] sm:$0xff]
    %v120 = vld [vmem:[#allocation2 + $0x8] sm:$0xff]
    %v121 = vld [vmem:[#allocation2 + $0x10] sm:$0xff]
    %v122 = vld [vmem:[#allocation2 + $0x18] sm:$0xff]
    %v123 = vld [vmem:[#allocation7] sm:$0xff]
    %v124 = vld [vmem:[#allocation7 + $0x8] sm:$0xff]
    %v125 = vld [vmem:[#allocation7 + $0x10] sm:$0xff]
    %v126 = vld [vmem:[#allocation7 + $0x18] sm:$0xff]
    %v127 = vld [vmem:[#allocation7 + $0x20] sm:$0xff]
    %v128 = vld [vmem:[#allocation7 + $0x28] sm:$0xff]
    %v129 = vld [vmem:[#allocation7 + $0x30] sm:$0xff]
    %v130 = vld [vmem:[#allocation7 + $0x38] sm:$0xff]
    %v131 = vld [vmem:[#allocation7 + $0x40] sm:$0xff]
    %v132 = vld [vmem:[#allocation7 + $0x48] sm:$0xff]
    %v133 = vld [vmem:[#allocation7 + $0x50] sm:$0xff]
    %v134 = vld [vmem:[#allocation7 + $0x58] sm:$0xff]
    %v135 = vld [vmem:[#allocation7 + $0x60] sm:$0xff]
    %v136 = vld [vmem:[#allocation7 + $0x68] sm:$0xff]
    %v137 = vld [vmem:[#allocation7 + $0x70] sm:$0xff]
    %v138 = vld [vmem:[#allocation7 + $0x78] sm:$0xff]
    %v139 = vld [vmem:[#allocation7 + $0x80] sm:$0xff]
    %v140 = vld [vmem:[#allocation7 + $0x88] sm:$0xff]
    %v141 = vld [vmem:[#allocation7 + $0x90] sm:$0xff]
    %v142 = vld [vmem:[#allocation7 + $0x98] sm:$0xff]
    %v143 = vld [vmem:[#allocation7 + $0xa0] sm:$0xff]
    %v144 = vld [vmem:[#allocation7 + $0xa8] sm:$0xff]
    %v145 = vld [vmem:[#allocation7 + $0xb0] sm:$0xff]
    %v146 = vld [vmem:[#allocation7 + $0xb8] sm:$0xff]
    %v147 = vld [vmem:[#allocation7 + $0xc0] sm:$0xff]
    %v148 = vld [vmem:[#allocation7 + $0xc8] sm:$0xff]
    %v149 = vld [vmem:[#allocation7 + $0xd0] sm:$0xff]
    %v150 = vld [vmem:[#allocation7 + $0xd8] sm:$0xff]
    %v151 = vld [vmem:[#allocation7 + $0xe0] sm:$0xff]
    %v152 = vld [vmem:[#allocation7 + $0xe8] sm:$0xff]
    %v153 = vld [vmem:[#allocation7 + $0xf0] sm:$0xff]
    %v154 = vld [vmem:[#allocation7 + $0xf8] sm:$0xff]
    %v155 = vld [vmem:[#allocation7 + $0x100] sm:$0xff]
    %v156 = vld [vmem:[#allocation7 + $0x108] sm:$0xff]
    %v157 = vld [vmem:[#allocation7 + $0x110] sm:$0xff]
    %v158 = vld [vmem:[#allocation7 + $0x118] sm:$0xff]
    %v159 = vld [vmem:[#allocation7 + $0x120] sm:$0xff]
    %v160 = vld [vmem:[#allocation7 + $0x128] sm:$0xff]
    %v161 = vld [vmem:[#allocation7 + $0x130] sm:$0xff]
    %v162 = vld [vmem:[#allocation7 + $0x138] sm:$0xff]
    %v163 = vld [vmem:[#allocation7 + $0x140] sm:$0xff]
    %v164 = vld [vmem:[#allocation7 + $0x148] sm:$0xff]
    %v165 = vld [vmem:[#allocation7 + $0x150] sm:$0xff]
    %v166 = vld [vmem:[#allocation7 + $0x158] sm:$0xff]
    %v167 = vld [vmem:[#allocation7 + $0x160] sm:$0xff]
    %v168 = vld [vmem:[#allocation7 + $0x168] sm:$0xff]
    %v169 = vld [vmem:[#allocation7 + $0x170] sm:$0xff]
    %v170 = vld [vmem:[#allocation7 + $0x178] sm:$0xff]
    %v171 = vld [vmem:[#allocation7 + $0x180] sm:$0xff]
    %v172 = vld [vmem:[#allocation7 + $0x188] sm:$0xff]
    %v173 = vld [vmem:[#allocation7 + $0x190] sm:$0xff]
    %v174 = vld [vmem:[#allocation7 + $0x198] sm:$0xff]
    %v175 = vld [vmem:[#allocation7 + $0x1a0] sm:$0xff]
    %v176 = vld [vmem:[#allocation7 + $0x1a8] sm:$0xff]
    %v177 = vld [vmem:[#allocation7 + $0x1b0] sm:$0xff]
    %v178 = vld [vmem:[#allocation7 + $0x1b8] sm:$0xff]
    %v179 = vld [vmem:[#allocation7 + $0x1c0] sm:$0xff]
    %v180 = vld [vmem:[#allocation7 + $0x1c8] sm:$0xff]
    %v181 = vld [vmem:[#allocation7 + $0x1d0] sm:$0xff]
    %v182 = vld [vmem:[#allocation7 + $0x1d8] sm:$0xff]
    %v183 = vld [vmem:[#allocation7 + $0x1e0] sm:$0xff]
    %v184 = vld [vmem:[#allocation7 + $0x1e8] sm:$0xff]
    %v185 = vld [vmem:[#allocation7 + $0x1f0] sm:$0xff]
    %v186 = vld [vmem:[#allocation7 + $0x1f8] sm:$0xff]
    %v187 = vld [vmem:[#allocation8] sm:$0xff]
    %v188 = vld [vmem:[#allocation8 + $0x8] sm:$0xff]
    %v191 = vperm.slane %v187, 0
    %v192 = vperm.slane %v187, 1
    %v193 = vperm.slane %v187, 2
    %v194 = vperm.slane %v187, 3
    %v195 = vperm.slane %v187, 4
    %v196 = vperm.slane %v187, 5
    %v197 = vperm.slane %v187, 6
    %v198 = vperm.slane %v187, 7
    %v199 = vperm.slane %v188, 0
    %v200 = vperm.slane %v188, 1
    %v201 = vperm.slane %v188, 2
    %v202 = vperm.slane %v188, 3
    %v203 = vperm.slane %v188, 4
    %v204 = vperm.slane %v188, 5
    %v205 = vperm.slane %v188, 6
    %v206 = vperm.slane %v188, 7
    %vm223 = vcmask 261120
    %v225 = vsel %vm223, %v117, 0
    %v228 = vsel %vm223, %v118, 0
    %230 = vmatpush.msra.mxu0 0.0
    %231 = vmatpush.msra.mxu0 0.0
    %232 = vmatpush.msra.mxu0 0.0
    %233 = vmatpush.msra.mxu0 0.0
    %234 = vmatpush.msra.mxu0 0.0
    %235 = vmatpush.msra.mxu0 0.0
    %236 = vmatpush.msra.mxu0 0.0
    %237 = vmatpush.msra.mxu0 0.0
    %238 = vmatpush.msra.mxu0 0.0
    %239 = vmatpush.msra.mxu0 0.0
    %240 = vmatpush.msra.mxu0 0.0
    %241 = vmatpush.msra.mxu0 0.0
    %242 = vmatpush.msra.mxu0 %v171
    %243 = vmatpush.msra.mxu0 %v155
    %244 = vmatpush.msra.mxu0 %v139
    %245 = vmatpush.msra.mxu0 %v123
    %246 = vmatmul.f32.gmra.mxu0 %v225
    %v247 = vpop.f32.mrf.mxu0
    %v248 = vadd.f32 %v191, %v247
    %249 = vmatmul.f32.gmra.mxu0 %v228
    %v250 = vpop.f32.mrf.mxu0
    %v251 = vadd.f32 %v191, %v250
    %252 = vdwg.mxu0
    %253 = vmatpush.msra.mxu0 0.0
    %254 = vmatpush.msra.mxu0 0.0
    %255 = vmatpush.msra.mxu0 0.0
    %256 = vmatpush.msra.mxu0 0.0
    %257 = vmatpush.msra.mxu0 0.0
    %258 = vmatpush.msra.mxu0 0.0
    %259 = vmatpush.msra.mxu0 0.0
    %260 = vmatpush.msra.mxu0 0.0
    %261 = vmatpush.msra.mxu0 0.0
    %262 = vmatpush.msra.mxu0 0.0
    %263 = vmatpush.msra.mxu0 0.0
    %264 = vmatpush.msra.mxu0 0.0
    %265 = vmatpush.msra.mxu0 %v172
    %266 = vmatpush.msra.mxu0 %v156
    %267 = vmatpush.msra.mxu0 %v140
    %268 = vmatpush.msra.mxu0 %v124
    %269 = vmatmul.f32.gmra.mxu0 %v225
    %v270 = vpop.f32.mrf.mxu0
    %v271 = vadd.f32 %v192, %v270
    %272 = vmatmul.f32.gmra.mxu0 %v228
    %v273 = vpop.f32.mrf.mxu0
    %v274 = vadd.f32 %v192, %v273
    %275 = vdwg.mxu0
    %276 = vmatpush.msra.mxu0 0.0
    %277 = vmatpush.msra.mxu0 0.0
    %278 = vmatpush.msra.mxu0 0.0
    %279 = vmatpush.msra.mxu0 0.0
    %280 = vmatpush.msra.mxu0 0.0
    %281 = vmatpush.msra.mxu0 0.0
    %282 = vmatpush.msra.mxu0 0.0
    %283 = vmatpush.msra.mxu0 0.0
    %284 = vmatpush.msra.mxu0 0.0
    %285 = vmatpush.msra.mxu0 0.0
    %286 = vmatpush.msra.mxu0 0.0
    %287 = vmatpush.msra.mxu0 0.0
    %288 = vmatpush.msra.mxu0 %v173
    %289 = vmatpush.msra.mxu0 %v157
    %290 = vmatpush.msra.mxu0 %v141
    %291 = vmatpush.msra.mxu0 %v125
    %292 = vmatmul.f32.gmra.mxu0 %v225
    %v293 = vpop.f32.mrf.mxu0
    %v294 = vadd.f32 %v193, %v293
    %295 = vmatmul.f32.gmra.mxu0 %v228
    %v296 = vpop.f32.mrf.mxu0
    %v297 = vadd.f32 %v193, %v296
    %298 = vdwg.mxu0
    %299 = vmatpush.msra.mxu0 0.0
    %300 = vmatpush.msra.mxu0 0.0
    %301 = vmatpush.msra.mxu0 0.0
    %302 = vmatpush.msra.mxu0 0.0
    %303 = vmatpush.msra.mxu0 0.0
    %304 = vmatpush.msra.mxu0 0.0
    %305 = vmatpush.msra.mxu0 0.0
    %306 = vmatpush.msra.mxu0 0.0
    %307 = vmatpush.msra.mxu0 0.0
    %308 = vmatpush.msra.mxu0 0.0
    %309 = vmatpush.msra.mxu0 0.0
    %310 = vmatpush.msra.mxu0 0.0
    %311 = vmatpush.msra.mxu0 %v174
    %312 = vmatpush.msra.mxu0 %v158
    %313 = vmatpush.msra.mxu0 %v142
    %314 = vmatpush.msra.mxu0 %v126
    %315 = vmatmul.f32.gmra.mxu0 %v225
    %v316 = vpop.f32.mrf.mxu0
    %v317 = vadd.f32 %v194, %v316
    %318 = vmatmul.f32.gmra.mxu0 %v228
    %v319 = vpop.f32.mrf.mxu0
    %v320 = vadd.f32 %v194, %v319
    %321 = vdwg.mxu0
    %322 = vmatpush.msra.mxu0 0.0
    %323 = vmatpush.msra.mxu0 0.0
    %324 = vmatpush.msra.mxu0 0.0
    %325 = vmatpush.msra.mxu0 0.0
    %326 = vmatpush.msra.mxu0 0.0
    %327 = vmatpush.msra.mxu0 0.0
    %328 = vmatpush.msra.mxu0 0.0
    %329 = vmatpush.msra.mxu0 0.0
    %330 = vmatpush.msra.mxu0 0.0
    %331 = vmatpush.msra.mxu0 0.0
    %332 = vmatpush.msra.mxu0 0.0
    %333 = vmatpush.msra.mxu0 0.0
    %334 = vmatpush.msra.mxu0 %v175
    %335 = vmatpush.msra.mxu0 %v159
    %336 = vmatpush.msra.mxu0 %v143
    %337 = vmatpush.msra.mxu0 %v127
    %338 = vmatmul.f32.gmra.mxu0 %v225
    %v339 = vpop.f32.mrf.mxu0
    %v340 = vadd.f32 %v195, %v339
    %341 = vmatmul.f32.gmra.mxu0 %v228
    %v342 = vpop.f32.mrf.mxu0
    %v343 = vadd.f32 %v195, %v342
    %344 = vdwg.mxu0
    %345 = vmatpush.msra.mxu0 0.0
    %346 = vmatpush.msra.mxu0 0.0
    %347 = vmatpush.msra.mxu0 0.0
    %348 = vmatpush.msra.mxu0 0.0
    %349 = vmatpush.msra.mxu0 0.0
    %350 = vmatpush.msra.mxu0 0.0
    %351 = vmatpush.msra.mxu0 0.0
    %352 = vmatpush.msra.mxu0 0.0
    %353 = vmatpush.msra.mxu0 0.0
    %354 = vmatpush.msra.mxu0 0.0
    %355 = vmatpush.msra.mxu0 0.0
    %356 = vmatpush.msra.mxu0 0.0
    %357 = vmatpush.msra.mxu0 %v176
    %358 = vmatpush.msra.mxu0 %v160
    %359 = vmatpush.msra.mxu0 %v144
    %360 = vmatpush.msra.mxu0 %v128
    %361 = vmatmul.f32.gmra.mxu0 %v225
    %v362 = vpop.f32.mrf.mxu0
    %v363 = vadd.f32 %v196, %v362
    %364 = vmatmul.f32.gmra.mxu0 %v228
    %v365 = vpop.f32.mrf.mxu0
    %v366 = vadd.f32 %v196, %v365
    %367 = vdwg.mxu0
    %368 = vmatpush.msra.mxu0 0.0
    %369 = vmatpush.msra.mxu0 0.0
    %370 = vmatpush.msra.mxu0 0.0
    %371 = vmatpush.msra.mxu0 0.0
    %372 = vmatpush.msra.mxu0 0.0
    %373 = vmatpush.msra.mxu0 0.0
    %374 = vmatpush.msra.mxu0 0.0
    %375 = vmatpush.msra.mxu0 0.0
    %376 = vmatpush.msra.mxu0 0.0
    %377 = vmatpush.msra.mxu0 0.0
    %378 = vmatpush.msra.mxu0 0.0
    %379 = vmatpush.msra.mxu0 0.0
    %380 = vmatpush.msra.mxu0 %v177
    %381 = vmatpush.msra.mxu0 %v161
    %382 = vmatpush.msra.mxu0 %v145
    %383 = vmatpush.msra.mxu0 %v129
    %384 = vmatmul.f32.gmra.mxu0 %v225
    %v385 = vpop.f32.mrf.mxu0
    %v386 = vadd.f32 %v197, %v385
    %387 = vmatmul.f32.gmra.mxu0 %v228
    %v388 = vpop.f32.mrf.mxu0
    %v389 = vadd.f32 %v197, %v388
    %390 = vdwg.mxu0
    %391 = vmatpush.msra.mxu0 0.0
    %392 = vmatpush.msra.mxu0 0.0
    %393 = vmatpush.msra.mxu0 0.0
    %394 = vmatpush.msra.mxu0 0.0
    %395 = vmatpush.msra.mxu0 0.0
    %396 = vmatpush.msra.mxu0 0.0
    %397 = vmatpush.msra.mxu0 0.0
    %398 = vmatpush.msra.mxu0 0.0
    %399 = vmatpush.msra.mxu0 0.0
    %400 = vmatpush.msra.mxu0 0.0
    %401 = vmatpush.msra.mxu0 0.0
    %402 = vmatpush.msra.mxu0 0.0
    %403 = vmatpush.msra.mxu0 %v178
    %404 = vmatpush.msra.mxu0 %v162
    %405 = vmatpush.msra.mxu0 %v146
    %406 = vmatpush.msra.mxu0 %v130
    %407 = vmatmul.f32.gmra.mxu0 %v225
    %v408 = vpop.f32.mrf.mxu0
    %v409 = vadd.f32 %v198, %v408
    %410 = vmatmul.f32.gmra.mxu0 %v228
    %v411 = vpop.f32.mrf.mxu0
    %v412 = vadd.f32 %v198, %v411
    %413 = vdwg.mxu0
    %414 = vmatpush.msra.mxu0 0.0
    %415 = vmatpush.msra.mxu0 0.0
    %416 = vmatpush.msra.mxu0 0.0
    %417 = vmatpush.msra.mxu0 0.0
    %418 = vmatpush.msra.mxu0 0.0
    %419 = vmatpush.msra.mxu0 0.0
    %420 = vmatpush.msra.mxu0 0.0
    %421 = vmatpush.msra.mxu0 0.0
    %422 = vmatpush.msra.mxu0 0.0
    %423 = vmatpush.msra.mxu0 0.0
    %424 = vmatpush.msra.mxu0 0.0
    %425 = vmatpush.msra.mxu0 0.0
    %426 = vmatpush.msra.mxu0 %v179
    %427 = vmatpush.msra.mxu0 %v163
    %428 = vmatpush.msra.mxu0 %v147
    %429 = vmatpush.msra.mxu0 %v131
    %430 = vmatmul.f32.gmra.mxu0 %v225
    %v431 = vpop.f32.mrf.mxu0
    %v432 = vadd.f32 %v199, %v431
    %433 = vmatmul.f32.gmra.mxu0 %v228
    %v434 = vpop.f32.mrf.mxu0
    %v435 = vadd.f32 %v199, %v434
    %436 = vdwg.mxu0
    %437 = vmatpush.msra.mxu0 0.0
    %438 = vmatpush.msra.mxu0 0.0
    %439 = vmatpush.msra.mxu0 0.0
    %440 = vmatpush.msra.mxu0 0.0
    %441 = vmatpush.msra.mxu0 0.0
    %442 = vmatpush.msra.mxu0 0.0
    %443 = vmatpush.msra.mxu0 0.0
    %444 = vmatpush.msra.mxu0 0.0
    %445 = vmatpush.msra.mxu0 0.0
    %446 = vmatpush.msra.mxu0 0.0
    %447 = vmatpush.msra.mxu0 0.0
    %448 = vmatpush.msra.mxu0 0.0
    %449 = vmatpush.msra.mxu0 %v180
    %450 = vmatpush.msra.mxu0 %v164
    %451 = vmatpush.msra.mxu0 %v148
    %452 = vmatpush.msra.mxu0 %v132
    %453 = vmatmul.f32.gmra.mxu0 %v225
    %v454 = vpop.f32.mrf.mxu0
    %v455 = vadd.f32 %v200, %v454
    %456 = vmatmul.f32.gmra.mxu0 %v228
    %v457 = vpop.f32.mrf.mxu0
    %v458 = vadd.f32 %v200, %v457
    %459 = vdwg.mxu0
    %460 = vmatpush.msra.mxu0 0.0
    %461 = vmatpush.msra.mxu0 0.0
    %462 = vmatpush.msra.mxu0 0.0
    %463 = vmatpush.msra.mxu0 0.0
    %464 = vmatpush.msra.mxu0 0.0
    %465 = vmatpush.msra.mxu0 0.0
    %466 = vmatpush.msra.mxu0 0.0
    %467 = vmatpush.msra.mxu0 0.0
    %468 = vmatpush.msra.mxu0 0.0
    %469 = vmatpush.msra.mxu0 0.0
    %470 = vmatpush.msra.mxu0 0.0
    %471 = vmatpush.msra.mxu0 0.0
    %472 = vmatpush.msra.mxu0 %v181
    %473 = vmatpush.msra.mxu0 %v165
    %474 = vmatpush.msra.mxu0 %v149
    %475 = vmatpush.msra.mxu0 %v133
    %476 = vmatmul.f32.gmra.mxu0 %v225
    %v477 = vpop.f32.mrf.mxu0
    %v478 = vadd.f32 %v201, %v477
    %479 = vmatmul.f32.gmra.mxu0 %v228
    %v480 = vpop.f32.mrf.mxu0
    %v481 = vadd.f32 %v201, %v480
    %482 = vdwg.mxu0
    %483 = vmatpush.msra.mxu0 0.0
    %484 = vmatpush.msra.mxu0 0.0
    %485 = vmatpush.msra.mxu0 0.0
    %486 = vmatpush.msra.mxu0 0.0
    %487 = vmatpush.msra.mxu0 0.0
    %488 = vmatpush.msra.mxu0 0.0
    %489 = vmatpush.msra.mxu0 0.0
    %490 = vmatpush.msra.mxu0 0.0
    %491 = vmatpush.msra.mxu0 0.0
    %492 = vmatpush.msra.mxu0 0.0
    %493 = vmatpush.msra.mxu0 0.0
    %494 = vmatpush.msra.mxu0 0.0
    %495 = vmatpush.msra.mxu0 %v182
    %496 = vmatpush.msra.mxu0 %v166
    %497 = vmatpush.msra.mxu0 %v150
    %498 = vmatpush.msra.mxu0 %v134
    %499 = vmatmul.f32.gmra.mxu0 %v225
    %v500 = vpop.f32.mrf.mxu0
    %v501 = vadd.f32 %v202, %v500
    %502 = vmatmul.f32.gmra.mxu0 %v228
    %v503 = vpop.f32.mrf.mxu0
    %v504 = vadd.f32 %v202, %v503
    %505 = vdwg.mxu0
    %506 = vmatpush.msra.mxu0 0.0
    %507 = vmatpush.msra.mxu0 0.0
    %508 = vmatpush.msra.mxu0 0.0
    %509 = vmatpush.msra.mxu0 0.0
    %510 = vmatpush.msra.mxu0 0.0
    %511 = vmatpush.msra.mxu0 0.0
    %512 = vmatpush.msra.mxu0 0.0
    %513 = vmatpush.msra.mxu0 0.0
    %514 = vmatpush.msra.mxu0 0.0
    %515 = vmatpush.msra.mxu0 0.0
    %516 = vmatpush.msra.mxu0 0.0
    %517 = vmatpush.msra.mxu0 0.0
    %518 = vmatpush.msra.mxu0 %v183
    %519 = vmatpush.msra.mxu0 %v167
    %520 = vmatpush.msra.mxu0 %v151
    %521 = vmatpush.msra.mxu0 %v135
    %522 = vmatmul.f32.gmra.mxu0 %v225
    %v523 = vpop.f32.mrf.mxu0
    %v524 = vadd.f32 %v203, %v523
    %525 = vmatmul.f32.gmra.mxu0 %v228
    %v526 = vpop.f32.mrf.mxu0
    %v527 = vadd.f32 %v203, %v526
    %528 = vdwg.mxu0
    %529 = vmatpush.msra.mxu0 0.0
    %530 = vmatpush.msra.mxu0 0.0
    %531 = vmatpush.msra.mxu0 0.0
    %532 = vmatpush.msra.mxu0 0.0
    %533 = vmatpush.msra.mxu0 0.0
    %534 = vmatpush.msra.mxu0 0.0
    %535 = vmatpush.msra.mxu0 0.0
    %536 = vmatpush.msra.mxu0 0.0
    %537 = vmatpush.msra.mxu0 0.0
    %538 = vmatpush.msra.mxu0 0.0
    %539 = vmatpush.msra.mxu0 0.0
    %540 = vmatpush.msra.mxu0 0.0
    %541 = vmatpush.msra.mxu0 %v184
    %542 = vmatpush.msra.mxu0 %v168
    %543 = vmatpush.msra.mxu0 %v152
    %544 = vmatpush.msra.mxu0 %v136
    %545 = vmatmul.f32.gmra.mxu0 %v225
    %v546 = vpop.f32.mrf.mxu0
    %v547 = vadd.f32 %v204, %v546
    %548 = vmatmul.f32.gmra.mxu0 %v228
    %v549 = vpop.f32.mrf.mxu0
    %v550 = vadd.f32 %v204, %v549
    %551 = vdwg.mxu0
    %552 = vmatpush.msra.mxu0 0.0
    %553 = vmatpush.msra.mxu0 0.0
    %554 = vmatpush.msra.mxu0 0.0
    %555 = vmatpush.msra.mxu0 0.0
    %556 = vmatpush.msra.mxu0 0.0
    %557 = vmatpush.msra.mxu0 0.0
    %558 = vmatpush.msra.mxu0 0.0
    %559 = vmatpush.msra.mxu0 0.0
    %560 = vmatpush.msra.mxu0 0.0
    %561 = vmatpush.msra.mxu0 0.0
    %562 = vmatpush.msra.mxu0 0.0
    %563 = vmatpush.msra.mxu0 0.0
    %564 = vmatpush.msra.mxu0 %v185
    %565 = vmatpush.msra.mxu0 %v169
    %566 = vmatpush.msra.mxu0 %v153
    %567 = vmatpush.msra.mxu0 %v137
    %568 = vmatmul.f32.gmra.mxu0 %v225
    %v569 = vpop.f32.mrf.mxu0
    %v570 = vadd.f32 %v205, %v569
    %571 = vmatmul.f32.gmra.mxu0 %v228
    %v572 = vpop.f32.mrf.mxu0
    %v573 = vadd.f32 %v205, %v572
    %574 = vdwg.mxu0
    %575 = vmatpush.msra.mxu0 0.0
    %576 = vmatpush.msra.mxu0 0.0
    %577 = vmatpush.msra.mxu0 0.0
    %578 = vmatpush.msra.mxu0 0.0
    %579 = vmatpush.msra.mxu0 0.0
    %580 = vmatpush.msra.mxu0 0.0
    %581 = vmatpush.msra.mxu0 0.0
    %582 = vmatpush.msra.mxu0 0.0
    %583 = vmatpush.msra.mxu0 0.0
    %584 = vmatpush.msra.mxu0 0.0
    %585 = vmatpush.msra.mxu0 0.0
    %586 = vmatpush.msra.mxu0 0.0
    %587 = vmatpush.msra.mxu0 %v186
    %588 = vmatpush.msra.mxu0 %v170
    %589 = vmatpush.msra.mxu0 %v154
    %590 = vmatpush.msra.mxu0 %v138
    %591 = vmatmul.f32.gmra.mxu0 %v225
    %v592 = vpop.f32.mrf.mxu0
    %v593 = vadd.f32 %v206, %v592
    %594 = vmatmul.f32.gmra.mxu0 %v228
    %v595 = vpop.f32.mrf.mxu0
    %v596 = vadd.f32 %v206, %v595
    %597 = vdwg.mxu0
    %v598 = vmul.f32 %v248, %v119
    %v599 = vmul.f32 %v271, %v120
    %v600 = vmul.f32 %v294, %v119
    %v601 = vmul.f32 %v317, %v120
    %v602 = vmul.f32 %v340, %v119
    %v603 = vmul.f32 %v363, %v120
    %v604 = vmul.f32 %v386, %v119
    %v605 = vmul.f32 %v409, %v120
    %v606 = vmul.f32 %v432, %v119
    %v607 = vmul.f32 %v455, %v120
    %v608 = vmul.f32 %v478, %v119
    %v609 = vmul.f32 %v501, %v120
    %v610 = vmul.f32 %v524, %v119
    %v611 = vmul.f32 %v547, %v120
    %v612 = vmul.f32 %v570, %v119
    %v613 = vmul.f32 %v593, %v120
    %v614 = vmul.f32 %v251, %v121
    %v615 = vmul.f32 %v274, %v122
    %v616 = vmul.f32 %v297, %v121
    %v617 = vmul.f32 %v320, %v122
    %v618 = vmul.f32 %v343, %v121
    %v619 = vmul.f32 %v366, %v122
    %v620 = vmul.f32 %v389, %v121
    %v621 = vmul.f32 %v412, %v122
    %v622 = vmul.f32 %v435, %v121
    %v623 = vmul.f32 %v458, %v122
    %v624 = vmul.f32 %v481, %v121
    %v625 = vmul.f32 %v504, %v122
    %v626 = vmul.f32 %v527, %v121
    %v627 = vmul.f32 %v550, %v122
    %v628 = vmul.f32 %v573, %v121
    %v629 = vmul.f32 %v596, %v122
    %v630 = vld [vmem:[#allocation10] sm:$0xff]
    %v631 = vld [vmem:[#allocation10 + $0x8] sm:$0xff]
    %v632 = vld [vmem:[#allocation10 + $0x10] sm:$0xff]
    %v633 = vld [vmem:[#allocation10 + $0x18] sm:$0xff]
    %v634 = vld [vmem:[#allocation10 + $0x20] sm:$0xff]
    %v635 = vld [vmem:[#allocation10 + $0x28] sm:$0xff]
    %v636 = vld [vmem:[#allocation10 + $0x30] sm:$0xff]
    %v637 = vld [vmem:[#allocation10 + $0x38] sm:$0xff]
    %v638 = vld [vmem:[#allocation10 + $0x40] sm:$0xff]
    %v639 = vld [vmem:[#allocation10 + $0x48] sm:$0xff]
    %v640 = vld [vmem:[#allocation10 + $0x50] sm:$0xff]
    %v641 = vld [vmem:[#allocation10 + $0x58] sm:$0xff]
    %v642 = vld [vmem:[#allocation10 + $0x60] sm:$0xff]
    %v643 = vld [vmem:[#allocation10 + $0x68] sm:$0xff]
    %v644 = vld [vmem:[#allocation10 + $0x70] sm:$0xff]
    %v645 = vld [vmem:[#allocation10 + $0x78] sm:$0xff]
    %v646 = vld [vmem:[#allocation10 + $0x80] sm:$0xff]
    %v647 = vld [vmem:[#allocation10 + $0x88] sm:$0xff]
    %v648 = vld [vmem:[#allocation10 + $0x90] sm:$0xff]
    %v649 = vld [vmem:[#allocation10 + $0x98] sm:$0xff]
    %v650 = vld [vmem:[#allocation10 + $0xa0] sm:$0xff]
    %v651 = vld [vmem:[#allocation10 + $0xa8] sm:$0xff]
    %v652 = vld [vmem:[#allocation10 + $0xb0] sm:$0xff]
    %v653 = vld [vmem:[#allocation10 + $0xb8] sm:$0xff]
    %v654 = vld [vmem:[#allocation10 + $0xc0] sm:$0xff]
    %v655 = vld [vmem:[#allocation10 + $0xc8] sm:$0xff]
    %v656 = vld [vmem:[#allocation10 + $0xd0] sm:$0xff]
    %v657 = vld [vmem:[#allocation10 + $0xd8] sm:$0xff]
    %v658 = vld [vmem:[#allocation10 + $0xe0] sm:$0xff]
    %v659 = vld [vmem:[#allocation10 + $0xe8] sm:$0xff]
    %v660 = vld [vmem:[#allocation10 + $0xf0] sm:$0xff]
    %v661 = vld [vmem:[#allocation10 + $0xf8] sm:$0xff]
    %v662 = vld [vmem:[#allocation10 + $0x100] sm:$0xff]
    %v663 = vld [vmem:[#allocation10 + $0x108] sm:$0xff]
    %v664 = vld [vmem:[#allocation10 + $0x110] sm:$0xff]
    %v665 = vld [vmem:[#allocation10 + $0x118] sm:$0xff]
    %v666 = vld [vmem:[#allocation10 + $0x120] sm:$0xff]
    %v667 = vld [vmem:[#allocation10 + $0x128] sm:$0xff]
    %v668 = vld [vmem:[#allocation10 + $0x130] sm:$0xff]
    %v669 = vld [vmem:[#allocation10 + $0x138] sm:$0xff]
    %v670 = vld [vmem:[#allocation10 + $0x140] sm:$0xff]
    %v671 = vld [vmem:[#allocation10 + $0x148] sm:$0xff]
    %v672 = vld [vmem:[#allocation10 + $0x150] sm:$0xff]
    %v673 = vld [vmem:[#allocation10 + $0x158] sm:$0xff]
    %v674 = vld [vmem:[#allocation10 + $0x160] sm:$0xff]
    %v675 = vld [vmem:[#allocation10 + $0x168] sm:$0xff]
    %v676 = vld [vmem:[#allocation10 + $0x170] sm:$0xff]
    %v677 = vld [vmem:[#allocation10 + $0x178] sm:$0xff]
    %v678 = vld [vmem:[#allocation10 + $0x180] sm:$0xff]
    %v679 = vld [vmem:[#allocation10 + $0x188] sm:$0xff]
    %v680 = vld [vmem:[#allocation10 + $0x190] sm:$0xff]
    %v681 = vld [vmem:[#allocation10 + $0x198] sm:$0xff]
    %v682 = vld [vmem:[#allocation10 + $0x1a0] sm:$0xff]
    %v683 = vld [vmem:[#allocation10 + $0x1a8] sm:$0xff]
    %v684 = vld [vmem:[#allocation10 + $0x1b0] sm:$0xff]
    %v685 = vld [vmem:[#allocation10 + $0x1b8] sm:$0xff]
    %v686 = vld [vmem:[#allocation10 + $0x1c0] sm:$0xff]
    %v687 = vld [vmem:[#allocation10 + $0x1c8] sm:$0xff]
    %v688 = vld [vmem:[#allocation10 + $0x1d0] sm:$0xff]
    %v689 = vld [vmem:[#allocation10 + $0x1d8] sm:$0xff]
    %v690 = vld [vmem:[#allocation10 + $0x1e0] sm:$0xff]
    %v691 = vld [vmem:[#allocation10 + $0x1e8] sm:$0xff]
    %v692 = vld [vmem:[#allocation10 + $0x1f0] sm:$0xff]
    %v693 = vld [vmem:[#allocation10 + $0x1f8] sm:$0xff]
    %v694 = vld [vmem:[#allocation10 + $0x200] sm:$0xff]
    %v695 = vld [vmem:[#allocation10 + $0x208] sm:$0xff]
    %v696 = vld [vmem:[#allocation10 + $0x210] sm:$0xff]
    %v697 = vld [vmem:[#allocation10 + $0x218] sm:$0xff]
    %v698 = vld [vmem:[#allocation10 + $0x220] sm:$0xff]
    %v699 = vld [vmem:[#allocation10 + $0x228] sm:$0xff]
    %v700 = vld [vmem:[#allocation10 + $0x230] sm:$0xff]
    %v701 = vld [vmem:[#allocation10 + $0x238] sm:$0xff]
    %v702 = vld [vmem:[#allocation10 + $0x240] sm:$0xff]
    %v703 = vld [vmem:[#allocation10 + $0x248] sm:$0xff]
    %v704 = vld [vmem:[#allocation10 + $0x250] sm:$0xff]
    %v705 = vld [vmem:[#allocation10 + $0x258] sm:$0xff]
    %v706 = vld [vmem:[#allocation10 + $0x260] sm:$0xff]
    %v707 = vld [vmem:[#allocation10 + $0x268] sm:$0xff]
    %v708 = vld [vmem:[#allocation10 + $0x270] sm:$0xff]
    %v709 = vld [vmem:[#allocation10 + $0x278] sm:$0xff]
    %v710 = vld [vmem:[#allocation10 + $0x280] sm:$0xff]
    %v711 = vld [vmem:[#allocation10 + $0x288] sm:$0xff]
    %v712 = vld [vmem:[#allocation10 + $0x290] sm:$0xff]
    %v713 = vld [vmem:[#allocation10 + $0x298] sm:$0xff]
    %v714 = vld [vmem:[#allocation10 + $0x2a0] sm:$0xff]
    %v715 = vld [vmem:[#allocation10 + $0x2a8] sm:$0xff]
    %v716 = vld [vmem:[#allocation10 + $0x2b0] sm:$0xff]
    %v717 = vld [vmem:[#allocation10 + $0x2b8] sm:$0xff]
    %v718 = vld [vmem:[#allocation10 + $0x2c0] sm:$0xff]
    %v719 = vld [vmem:[#allocation10 + $0x2c8] sm:$0xff]
    %v720 = vld [vmem:[#allocation10 + $0x2d0] sm:$0xff]
    %v721 = vld [vmem:[#allocation10 + $0x2d8] sm:$0xff]
    %v722 = vld [vmem:[#allocation10 + $0x2e0] sm:$0xff]
    %v723 = vld [vmem:[#allocation10 + $0x2e8] sm:$0xff]
    %v724 = vld [vmem:[#allocation10 + $0x2f0] sm:$0xff]
    %v725 = vld [vmem:[#allocation10 + $0x2f8] sm:$0xff]
    %v726 = vld [vmem:[#allocation10 + $0x300] sm:$0xff]
    %v727 = vld [vmem:[#allocation10 + $0x308] sm:$0xff]
    %v728 = vld [vmem:[#allocation10 + $0x310] sm:$0xff]
    %v729 = vld [vmem:[#allocation10 + $0x318] sm:$0xff]
    %v730 = vld [vmem:[#allocation10 + $0x320] sm:$0xff]
    %v731 = vld [vmem:[#allocation10 + $0x328] sm:$0xff]
    %v732 = vld [vmem:[#allocation10 + $0x330] sm:$0xff]
    %v733 = vld [vmem:[#allocation10 + $0x338] sm:$0xff]
    %v734 = vld [vmem:[#allocation10 + $0x340] sm:$0xff]
    %v735 = vld [vmem:[#allocation10 + $0x348] sm:$0xff]
    %v736 = vld [vmem:[#allocation10 + $0x350] sm:$0xff]
    %v737 = vld [vmem:[#allocation10 + $0x358] sm:$0xff]
    %v738 = vld [vmem:[#allocation10 + $0x360] sm:$0xff]
    %v739 = vld [vmem:[#allocation10 + $0x368] sm:$0xff]
    %v740 = vld [vmem:[#allocation10 + $0x370] sm:$0xff]
    %v741 = vld [vmem:[#allocation10 + $0x378] sm:$0xff]
    %v742 = vld [vmem:[#allocation10 + $0x380] sm:$0xff]
    %v743 = vld [vmem:[#allocation10 + $0x388] sm:$0xff]
    %v744 = vld [vmem:[#allocation10 + $0x390] sm:$0xff]
    %v745 = vld [vmem:[#allocation10 + $0x398] sm:$0xff]
    %v746 = vld [vmem:[#allocation10 + $0x3a0] sm:$0xff]
    %v747 = vld [vmem:[#allocation10 + $0x3a8] sm:$0xff]
    %v748 = vld [vmem:[#allocation10 + $0x3b0] sm:$0xff]
    %v749 = vld [vmem:[#allocation10 + $0x3b8] sm:$0xff]
    %v750 = vld [vmem:[#allocation10 + $0x3c0] sm:$0xff]
    %v751 = vld [vmem:[#allocation10 + $0x3c8] sm:$0xff]
    %v752 = vld [vmem:[#allocation10 + $0x3d0] sm:$0xff]
    %v753 = vld [vmem:[#allocation10 + $0x3d8] sm:$0xff]
    %v754 = vld [vmem:[#allocation10 + $0x3e0] sm:$0xff]
    %v755 = vld [vmem:[#allocation10 + $0x3e8] sm:$0xff]
    %v756 = vld [vmem:[#allocation10 + $0x3f0] sm:$0xff]
    %v757 = vld [vmem:[#allocation10 + $0x3f8] sm:$0xff]
    %v758 = vld [vmem:[#allocation10 + $0x400] sm:$0xff]
    %v759 = vld [vmem:[#allocation10 + $0x408] sm:$0xff]
    %v760 = vld [vmem:[#allocation10 + $0x410] sm:$0xff]
    %v761 = vld [vmem:[#allocation10 + $0x418] sm:$0xff]
    %v762 = vld [vmem:[#allocation10 + $0x420] sm:$0xff]
    %v763 = vld [vmem:[#allocation10 + $0x428] sm:$0xff]
    %v764 = vld [vmem:[#allocation10 + $0x430] sm:$0xff]
    %v765 = vld [vmem:[#allocation10 + $0x438] sm:$0xff]
    %v766 = vld [vmem:[#allocation10 + $0x440] sm:$0xff]
    %v767 = vld [vmem:[#allocation10 + $0x448] sm:$0xff]
    %v768 = vld [vmem:[#allocation10 + $0x450] sm:$0xff]
    %v769 = vld [vmem:[#allocation10 + $0x458] sm:$0xff]
    %v770 = vld [vmem:[#allocation10 + $0x460] sm:$0xff]
    %v771 = vld [vmem:[#allocation10 + $0x468] sm:$0xff]
    %v772 = vld [vmem:[#allocation10 + $0x470] sm:$0xff]
    %v773 = vld [vmem:[#allocation10 + $0x478] sm:$0xff]
    %v774 = vld [vmem:[#allocation10 + $0x480] sm:$0xff]
    %v775 = vld [vmem:[#allocation10 + $0x488] sm:$0xff]
    %v776 = vld [vmem:[#allocation10 + $0x490] sm:$0xff]
    %v777 = vld [vmem:[#allocation10 + $0x498] sm:$0xff]
    %v778 = vld [vmem:[#allocation10 + $0x4a0] sm:$0xff]
    %v779 = vld [vmem:[#allocation10 + $0x4a8] sm:$0xff]
    %v780 = vld [vmem:[#allocation10 + $0x4b0] sm:$0xff]
    %v781 = vld [vmem:[#allocation10 + $0x4b8] sm:$0xff]
    %v782 = vld [vmem:[#allocation10 + $0x4c0] sm:$0xff]
    %v783 = vld [vmem:[#allocation10 + $0x4c8] sm:$0xff]
    %v784 = vld [vmem:[#allocation10 + $0x4d0] sm:$0xff]
    %v785 = vld [vmem:[#allocation10 + $0x4d8] sm:$0xff]
    %v786 = vld [vmem:[#allocation10 + $0x4e0] sm:$0xff]
    %v787 = vld [vmem:[#allocation10 + $0x4e8] sm:$0xff]
    %v788 = vld [vmem:[#allocation10 + $0x4f0] sm:$0xff]
    %v789 = vld [vmem:[#allocation10 + $0x4f8] sm:$0xff]
    %v790 = vld [vmem:[#allocation10 + $0x500] sm:$0xff]
    %v791 = vld [vmem:[#allocation10 + $0x508] sm:$0xff]
    %v792 = vld [vmem:[#allocation10 + $0x510] sm:$0xff]
    %v793 = vld [vmem:[#allocation10 + $0x518] sm:$0xff]
    %v794 = vld [vmem:[#allocation10 + $0x520] sm:$0xff]
    %v795 = vld [vmem:[#allocation10 + $0x528] sm:$0xff]
    %v796 = vld [vmem:[#allocation10 + $0x530] sm:$0xff]
    %v797 = vld [vmem:[#allocation10 + $0x538] sm:$0xff]
    %v798 = vld [vmem:[#allocation10 + $0x540] sm:$0xff]
    %v799 = vld [vmem:[#allocation10 + $0x548] sm:$0xff]
    %v800 = vld [vmem:[#allocation10 + $0x550] sm:$0xff]
    %v801 = vld [vmem:[#allocation10 + $0x558] sm:$0xff]
    %v802 = vld [vmem:[#allocation10 + $0x560] sm:$0xff]
    %v803 = vld [vmem:[#allocation10 + $0x568] sm:$0xff]
    %v804 = vld [vmem:[#allocation10 + $0x570] sm:$0xff]
    %v805 = vld [vmem:[#allocation10 + $0x578] sm:$0xff]
    %v806 = vld [vmem:[#allocation10 + $0x580] sm:$0xff]
    %v807 = vld [vmem:[#allocation10 + $0x588] sm:$0xff]
    %v808 = vld [vmem:[#allocation10 + $0x590] sm:$0xff]
    %v809 = vld [vmem:[#allocation10 + $0x598] sm:$0xff]
    %v810 = vld [vmem:[#allocation10 + $0x5a0] sm:$0xff]
    %v811 = vld [vmem:[#allocation10 + $0x5a8] sm:$0xff]
    %v812 = vld [vmem:[#allocation10 + $0x5b0] sm:$0xff]
    %v813 = vld [vmem:[#allocation10 + $0x5b8] sm:$0xff]
    %v814 = vld [vmem:[#allocation10 + $0x5c0] sm:$0xff]
    %v815 = vld [vmem:[#allocation10 + $0x5c8] sm:$0xff]
    %v816 = vld [vmem:[#allocation10 + $0x5d0] sm:$0xff]
    %v817 = vld [vmem:[#allocation10 + $0x5d8] sm:$0xff]
    %v818 = vld [vmem:[#allocation10 + $0x5e0] sm:$0xff]
    %v819 = vld [vmem:[#allocation10 + $0x5e8] sm:$0xff]
    %v820 = vld [vmem:[#allocation10 + $0x5f0] sm:$0xff]
    %v821 = vld [vmem:[#allocation10 + $0x5f8] sm:$0xff]
    %v822 = vld [vmem:[#allocation10 + $0x600] sm:$0xff]
    %v823 = vld [vmem:[#allocation10 + $0x608] sm:$0xff]
    %v824 = vld [vmem:[#allocation10 + $0x610] sm:$0xff]
    %v825 = vld [vmem:[#allocation10 + $0x618] sm:$0xff]
    %v826 = vld [vmem:[#allocation10 + $0x620] sm:$0xff]
    %v827 = vld [vmem:[#allocation10 + $0x628] sm:$0xff]
    %v828 = vld [vmem:[#allocation10 + $0x630] sm:$0xff]
    %v829 = vld [vmem:[#allocation10 + $0x638] sm:$0xff]
    %v830 = vld [vmem:[#allocation10 + $0x640] sm:$0xff]
    %v831 = vld [vmem:[#allocation10 + $0x648] sm:$0xff]
    %v832 = vld [vmem:[#allocation10 + $0x650] sm:$0xff]
    %v833 = vld [vmem:[#allocation10 + $0x658] sm:$0xff]
    %v834 = vld [vmem:[#allocation10 + $0x660] sm:$0xff]
    %v835 = vld [vmem:[#allocation10 + $0x668] sm:$0xff]
    %v836 = vld [vmem:[#allocation10 + $0x670] sm:$0xff]
    %v837 = vld [vmem:[#allocation10 + $0x678] sm:$0xff]
    %v838 = vld [vmem:[#allocation10 + $0x680] sm:$0xff]
    %v839 = vld [vmem:[#allocation10 + $0x688] sm:$0xff]
    %v840 = vld [vmem:[#allocation10 + $0x690] sm:$0xff]
    %v841 = vld [vmem:[#allocation10 + $0x698] sm:$0xff]
    %v842 = vld [vmem:[#allocation10 + $0x6a0] sm:$0xff]
    %v843 = vld [vmem:[#allocation10 + $0x6a8] sm:$0xff]
    %v844 = vld [vmem:[#allocation10 + $0x6b0] sm:$0xff]
    %v845 = vld [vmem:[#allocation10 + $0x6b8] sm:$0xff]
    %v846 = vld [vmem:[#allocation10 + $0x6c0] sm:$0xff]
    %v847 = vld [vmem:[#allocation10 + $0x6c8] sm:$0xff]
    %v848 = vld [vmem:[#allocation10 + $0x6d0] sm:$0xff]
    %v849 = vld [vmem:[#allocation10 + $0x6d8] sm:$0xff]
    %v850 = vld [vmem:[#allocation10 + $0x6e0] sm:$0xff]
    %v851 = vld [vmem:[#allocation10 + $0x6e8] sm:$0xff]
    %v852 = vld [vmem:[#allocation10 + $0x6f0] sm:$0xff]
    %v853 = vld [vmem:[#allocation10 + $0x6f8] sm:$0xff]
    %v854 = vld [vmem:[#allocation10 + $0x700] sm:$0xff]
    %v855 = vld [vmem:[#allocation10 + $0x708] sm:$0xff]
    %v856 = vld [vmem:[#allocation10 + $0x710] sm:$0xff]
    %v857 = vld [vmem:[#allocation10 + $0x718] sm:$0xff]
    %v858 = vld [vmem:[#allocation10 + $0x720] sm:$0xff]
    %v859 = vld [vmem:[#allocation10 + $0x728] sm:$0xff]
    %v860 = vld [vmem:[#allocation10 + $0x730] sm:$0xff]
    %v861 = vld [vmem:[#allocation10 + $0x738] sm:$0xff]
    %v862 = vld [vmem:[#allocation10 + $0x740] sm:$0xff]
    %v863 = vld [vmem:[#allocation10 + $0x748] sm:$0xff]
    %v864 = vld [vmem:[#allocation10 + $0x750] sm:$0xff]
    %v865 = vld [vmem:[#allocation10 + $0x758] sm:$0xff]
    %v866 = vld [vmem:[#allocation10 + $0x760] sm:$0xff]
    %v867 = vld [vmem:[#allocation10 + $0x768] sm:$0xff]
    %v868 = vld [vmem:[#allocation10 + $0x770] sm:$0xff]
    %v869 = vld [vmem:[#allocation10 + $0x778] sm:$0xff]
    %v870 = vld [vmem:[#allocation10 + $0x780] sm:$0xff]
    %v871 = vld [vmem:[#allocation10 + $0x788] sm:$0xff]
    %v872 = vld [vmem:[#allocation10 + $0x790] sm:$0xff]
    %v873 = vld [vmem:[#allocation10 + $0x798] sm:$0xff]
    %v874 = vld [vmem:[#allocation10 + $0x7a0] sm:$0xff]
    %v875 = vld [vmem:[#allocation10 + $0x7a8] sm:$0xff]
    %v876 = vld [vmem:[#allocation10 + $0x7b0] sm:$0xff]
    %v877 = vld [vmem:[#allocation10 + $0x7b8] sm:$0xff]
    %v878 = vld [vmem:[#allocation10 + $0x7c0] sm:$0xff]
    %v879 = vld [vmem:[#allocation10 + $0x7c8] sm:$0xff]
    %v880 = vld [vmem:[#allocation10 + $0x7d0] sm:$0xff]
    %v881 = vld [vmem:[#allocation10 + $0x7d8] sm:$0xff]
    %v882 = vld [vmem:[#allocation10 + $0x7e0] sm:$0xff]
    %v883 = vld [vmem:[#allocation10 + $0x7e8] sm:$0xff]
    %v884 = vld [vmem:[#allocation10 + $0x7f0] sm:$0xff]
    %v885 = vld [vmem:[#allocation10 + $0x7f8] sm:$0xff]
    %v886 = vld [vmem:[#allocation10 + $0x800] sm:$0xff]
    %v887 = vld [vmem:[#allocation10 + $0x808] sm:$0xff]
    %v888 = vld [vmem:[#allocation10 + $0x810] sm:$0xff]
    %v889 = vld [vmem:[#allocation10 + $0x818] sm:$0xff]
    %v890 = vld [vmem:[#allocation10 + $0x820] sm:$0xff]
    %v891 = vld [vmem:[#allocation10 + $0x828] sm:$0xff]
    %v892 = vld [vmem:[#allocation10 + $0x830] sm:$0xff]
    %v893 = vld [vmem:[#allocation10 + $0x838] sm:$0xff]
    %v894 = vld [vmem:[#allocation10 + $0x840] sm:$0xff]
    %v895 = vld [vmem:[#allocation10 + $0x848] sm:$0xff]
    %v896 = vld [vmem:[#allocation10 + $0x850] sm:$0xff]
    %v897 = vld [vmem:[#allocation10 + $0x858] sm:$0xff]
    %v898 = vld [vmem:[#allocation10 + $0x860] sm:$0xff]
    %v899 = vld [vmem:[#allocation10 + $0x868] sm:$0xff]
    %v900 = vld [vmem:[#allocation10 + $0x870] sm:$0xff]
    %v901 = vld [vmem:[#allocation10 + $0x878] sm:$0xff]
    %v902 = vld [vmem:[#allocation10 + $0x880] sm:$0xff]
    %v903 = vld [vmem:[#allocation10 + $0x888] sm:$0xff]
    %v904 = vld [vmem:[#allocation10 + $0x890] sm:$0xff]
    %v905 = vld [vmem:[#allocation10 + $0x898] sm:$0xff]
    %v906 = vld [vmem:[#allocation10 + $0x8a0] sm:$0xff]
    %v907 = vld [vmem:[#allocation10 + $0x8a8] sm:$0xff]
    %v908 = vld [vmem:[#allocation10 + $0x8b0] sm:$0xff]
    %v909 = vld [vmem:[#allocation10 + $0x8b8] sm:$0xff]
    %v910 = vld [vmem:[#allocation10 + $0x8c0] sm:$0xff]
    %v911 = vld [vmem:[#allocation10 + $0x8c8] sm:$0xff]
    %v912 = vld [vmem:[#allocation10 + $0x8d0] sm:$0xff]
    %v913 = vld [vmem:[#allocation10 + $0x8d8] sm:$0xff]
    %v914 = vld [vmem:[#allocation10 + $0x8e0] sm:$0xff]
    %v915 = vld [vmem:[#allocation10 + $0x8e8] sm:$0xff]
    %v916 = vld [vmem:[#allocation10 + $0x8f0] sm:$0xff]
    %v917 = vld [vmem:[#allocation10 + $0x8f8] sm:$0xff]
    %v918 = vld [vmem:[#allocation10 + $0x900] sm:$0xff]
    %v919 = vld [vmem:[#allocation10 + $0x908] sm:$0xff]
    %v920 = vld [vmem:[#allocation10 + $0x910] sm:$0xff]
    %v921 = vld [vmem:[#allocation10 + $0x918] sm:$0xff]
    %v922 = vld [vmem:[#allocation10 + $0x920] sm:$0xff]
    %v923 = vld [vmem:[#allocation10 + $0x928] sm:$0xff]
    %v924 = vld [vmem:[#allocation10 + $0x930] sm:$0xff]
    %v925 = vld [vmem:[#allocation10 + $0x938] sm:$0xff]
    %v926 = vld [vmem:[#allocation10 + $0x940] sm:$0xff]
    %v927 = vld [vmem:[#allocation10 + $0x948] sm:$0xff]
    %v928 = vld [vmem:[#allocation10 + $0x950] sm:$0xff]
    %v929 = vld [vmem:[#allocation10 + $0x958] sm:$0xff]
    %v930 = vld [vmem:[#allocation10 + $0x960] sm:$0xff]
    %v931 = vld [vmem:[#allocation10 + $0x968] sm:$0xff]
    %v932 = vld [vmem:[#allocation10 + $0x970] sm:$0xff]
    %v933 = vld [vmem:[#allocation10 + $0x978] sm:$0xff]
    %v934 = vld [vmem:[#allocation10 + $0x980] sm:$0xff]
    %v935 = vld [vmem:[#allocation10 + $0x988] sm:$0xff]
    %v936 = vld [vmem:[#allocation10 + $0x990] sm:$0xff]
    %v937 = vld [vmem:[#allocation10 + $0x998] sm:$0xff]
    %v938 = vld [vmem:[#allocation10 + $0x9a0] sm:$0xff]
    %v939 = vld [vmem:[#allocation10 + $0x9a8] sm:$0xff]
    %v940 = vld [vmem:[#allocation10 + $0x9b0] sm:$0xff]
    %v941 = vld [vmem:[#allocation10 + $0x9b8] sm:$0xff]
    %v942 = vld [vmem:[#allocation10 + $0x9c0] sm:$0xff]
    %v943 = vld [vmem:[#allocation10 + $0x9c8] sm:$0xff]
    %v944 = vld [vmem:[#allocation10 + $0x9d0] sm:$0xff]
    %v945 = vld [vmem:[#allocation10 + $0x9d8] sm:$0xff]
    %v946 = vld [vmem:[#allocation10 + $0x9e0] sm:$0xff]
    %v947 = vld [vmem:[#allocation10 + $0x9e8] sm:$0xff]
    %v948 = vld [vmem:[#allocation10 + $0x9f0] sm:$0xff]
    %v949 = vld [vmem:[#allocation10 + $0x9f8] sm:$0xff]
    %v950 = vld [vmem:[#allocation10 + $0xa00] sm:$0xff]
    %v951 = vld [vmem:[#allocation10 + $0xa08] sm:$0xff]
    %v952 = vld [vmem:[#allocation10 + $0xa10] sm:$0xff]
    %v953 = vld [vmem:[#allocation10 + $0xa18] sm:$0xff]
    %v954 = vld [vmem:[#allocation10 + $0xa20] sm:$0xff]
    %v955 = vld [vmem:[#allocation10 + $0xa28] sm:$0xff]
    %v956 = vld [vmem:[#allocation10 + $0xa30] sm:$0xff]
    %v957 = vld [vmem:[#allocation10 + $0xa38] sm:$0xff]
    %v958 = vld [vmem:[#allocation10 + $0xa40] sm:$0xff]
    %v959 = vld [vmem:[#allocation10 + $0xa48] sm:$0xff]
    %v960 = vld [vmem:[#allocation10 + $0xa50] sm:$0xff]
    %v961 = vld [vmem:[#allocation10 + $0xa58] sm:$0xff]
    %v962 = vld [vmem:[#allocation10 + $0xa60] sm:$0xff]
    %v963 = vld [vmem:[#allocation10 + $0xa68] sm:$0xff]
    %v964 = vld [vmem:[#allocation10 + $0xa70] sm:$0xff]
    %v965 = vld [vmem:[#allocation10 + $0xa78] sm:$0xff]
    %v966 = vld [vmem:[#allocation10 + $0xa80] sm:$0xff]
    %v967 = vld [vmem:[#allocation10 + $0xa88] sm:$0xff]
    %v968 = vld [vmem:[#allocation10 + $0xa90] sm:$0xff]
    %v969 = vld [vmem:[#allocation10 + $0xa98] sm:$0xff]
    %v970 = vld [vmem:[#allocation10 + $0xaa0] sm:$0xff]
    %v971 = vld [vmem:[#allocation10 + $0xaa8] sm:$0xff]
    %v972 = vld [vmem:[#allocation10 + $0xab0] sm:$0xff]
    %v973 = vld [vmem:[#allocation10 + $0xab8] sm:$0xff]
    %v974 = vld [vmem:[#allocation10 + $0xac0] sm:$0xff]
    %v975 = vld [vmem:[#allocation10 + $0xac8] sm:$0xff]
    %v976 = vld [vmem:[#allocation10 + $0xad0] sm:$0xff]
    %v977 = vld [vmem:[#allocation10 + $0xad8] sm:$0xff]
    %v978 = vld [vmem:[#allocation10 + $0xae0] sm:$0xff]
    %v979 = vld [vmem:[#allocation10 + $0xae8] sm:$0xff]
    %v980 = vld [vmem:[#allocation10 + $0xaf0] sm:$0xff]
    %v981 = vld [vmem:[#allocation10 + $0xaf8] sm:$0xff]
    %v982 = vld [vmem:[#allocation10 + $0xb00] sm:$0xff]
    %v983 = vld [vmem:[#allocation10 + $0xb08] sm:$0xff]
    %v984 = vld [vmem:[#allocation10 + $0xb10] sm:$0xff]
    %v985 = vld [vmem:[#allocation10 + $0xb18] sm:$0xff]
    %v986 = vld [vmem:[#allocation10 + $0xb20] sm:$0xff]
    %v987 = vld [vmem:[#allocation10 + $0xb28] sm:$0xff]
    %v988 = vld [vmem:[#allocation10 + $0xb30] sm:$0xff]
    %v989 = vld [vmem:[#allocation10 + $0xb38] sm:$0xff]
    %v990 = vld [vmem:[#allocation10 + $0xb40] sm:$0xff]
    %v991 = vld [vmem:[#allocation10 + $0xb48] sm:$0xff]
    %v992 = vld [vmem:[#allocation10 + $0xb50] sm:$0xff]
    %v993 = vld [vmem:[#allocation10 + $0xb58] sm:$0xff]
    %v994 = vld [vmem:[#allocation10 + $0xb60] sm:$0xff]
    %v995 = vld [vmem:[#allocation10 + $0xb68] sm:$0xff]
    %v996 = vld [vmem:[#allocation10 + $0xb70] sm:$0xff]
    %v997 = vld [vmem:[#allocation10 + $0xb78] sm:$0xff]
    %v998 = vld [vmem:[#allocation10 + $0xb80] sm:$0xff]
    %v999 = vld [vmem:[#allocation10 + $0xb88] sm:$0xff]
    %v1000 = vld [vmem:[#allocation10 + $0xb90] sm:$0xff]
    %v1001 = vld [vmem:[#allocation10 + $0xb98] sm:$0xff]
    %v1002 = vld [vmem:[#allocation10 + $0xba0] sm:$0xff]
    %v1003 = vld [vmem:[#allocation10 + $0xba8] sm:$0xff]
    %v1004 = vld [vmem:[#allocation10 + $0xbb0] sm:$0xff]
    %v1005 = vld [vmem:[#allocation10 + $0xbb8] sm:$0xff]
    %v1006 = vld [vmem:[#allocation10 + $0xbc0] sm:$0xff]
    %v1007 = vld [vmem:[#allocation10 + $0xbc8] sm:$0xff]
    %v1008 = vld [vmem:[#allocation10 + $0xbd0] sm:$0xff]
    %v1009 = vld [vmem:[#allocation10 + $0xbd8] sm:$0xff]
    %v1010 = vld [vmem:[#allocation10 + $0xbe0] sm:$0xff]
    %v1011 = vld [vmem:[#allocation10 + $0xbe8] sm:$0xff]
    %v1012 = vld [vmem:[#allocation10 + $0xbf0] sm:$0xff]
    %v1013 = vld [vmem:[#allocation10 + $0xbf8] sm:$0xff]
    %v1014 = vld [vmem:[#allocation10 + $0xc00] sm:$0xff]
    %v1015 = vld [vmem:[#allocation10 + $0xc08] sm:$0xff]
    %v1016 = vld [vmem:[#allocation10 + $0xc10] sm:$0xff]
    %v1017 = vld [vmem:[#allocation10 + $0xc18] sm:$0xff]
    %v1018 = vld [vmem:[#allocation10 + $0xc20] sm:$0xff]
    %v1019 = vld [vmem:[#allocation10 + $0xc28] sm:$0xff]
    %v1020 = vld [vmem:[#allocation10 + $0xc30] sm:$0xff]
    %v1021 = vld [vmem:[#allocation10 + $0xc38] sm:$0xff]
    %v1022 = vld [vmem:[#allocation10 + $0xc40] sm:$0xff]
    %v1023 = vld [vmem:[#allocation10 + $0xc48] sm:$0xff]
    %v1024 = vld [vmem:[#allocation10 + $0xc50] sm:$0xff]
    %v1025 = vld [vmem:[#allocation10 + $0xc58] sm:$0xff]
    %v1026 = vld [vmem:[#allocation10 + $0xc60] sm:$0xff]
    %v1027 = vld [vmem:[#allocation10 + $0xc68] sm:$0xff]
    %v1028 = vld [vmem:[#allocation10 + $0xc70] sm:$0xff]
    %v1029 = vld [vmem:[#allocation10 + $0xc78] sm:$0xff]
    %v1030 = vld [vmem:[#allocation10 + $0xc80] sm:$0xff]
    %v1031 = vld [vmem:[#allocation10 + $0xc88] sm:$0xff]
    %v1032 = vld [vmem:[#allocation10 + $0xc90] sm:$0xff]
    %v1033 = vld [vmem:[#allocation10 + $0xc98] sm:$0xff]
    %v1034 = vld [vmem:[#allocation10 + $0xca0] sm:$0xff]
    %v1035 = vld [vmem:[#allocation10 + $0xca8] sm:$0xff]
    %v1036 = vld [vmem:[#allocation10 + $0xcb0] sm:$0xff]
    %v1037 = vld [vmem:[#allocation10 + $0xcb8] sm:$0xff]
    %v1038 = vld [vmem:[#allocation10 + $0xcc0] sm:$0xff]
    %v1039 = vld [vmem:[#allocation10 + $0xcc8] sm:$0xff]
    %v1040 = vld [vmem:[#allocation10 + $0xcd0] sm:$0xff]
    %v1041 = vld [vmem:[#allocation10 + $0xcd8] sm:$0xff]
    %v1042 = vld [vmem:[#allocation10 + $0xce0] sm:$0xff]
    %v1043 = vld [vmem:[#allocation10 + $0xce8] sm:$0xff]
    %v1044 = vld [vmem:[#allocation10 + $0xcf0] sm:$0xff]
    %v1045 = vld [vmem:[#allocation10 + $0xcf8] sm:$0xff]
    %v1046 = vld [vmem:[#allocation10 + $0xd00] sm:$0xff]
    %v1047 = vld [vmem:[#allocation10 + $0xd08] sm:$0xff]
    %v1048 = vld [vmem:[#allocation10 + $0xd10] sm:$0xff]
    %v1049 = vld [vmem:[#allocation10 + $0xd18] sm:$0xff]
    %v1050 = vld [vmem:[#allocation10 + $0xd20] sm:$0xff]
    %v1051 = vld [vmem:[#allocation10 + $0xd28] sm:$0xff]
    %v1052 = vld [vmem:[#allocation10 + $0xd30] sm:$0xff]
    %v1053 = vld [vmem:[#allocation10 + $0xd38] sm:$0xff]
    %v1054 = vld [vmem:[#allocation10 + $0xd40] sm:$0xff]
    %v1055 = vld [vmem:[#allocation10 + $0xd48] sm:$0xff]
    %v1056 = vld [vmem:[#allocation10 + $0xd50] sm:$0xff]
    %v1057 = vld [vmem:[#allocation10 + $0xd58] sm:$0xff]
    %v1058 = vld [vmem:[#allocation10 + $0xd60] sm:$0xff]
    %v1059 = vld [vmem:[#allocation10 + $0xd68] sm:$0xff]
    %v1060 = vld [vmem:[#allocation10 + $0xd70] sm:$0xff]
    %v1061 = vld [vmem:[#allocation10 + $0xd78] sm:$0xff]
    %v1062 = vld [vmem:[#allocation10 + $0xd80] sm:$0xff]
    %v1063 = vld [vmem:[#allocation10 + $0xd88] sm:$0xff]
    %v1064 = vld [vmem:[#allocation10 + $0xd90] sm:$0xff]
    %v1065 = vld [vmem:[#allocation10 + $0xd98] sm:$0xff]
    %v1066 = vld [vmem:[#allocation10 + $0xda0] sm:$0xff]
    %v1067 = vld [vmem:[#allocation10 + $0xda8] sm:$0xff]
    %v1068 = vld [vmem:[#allocation10 + $0xdb0] sm:$0xff]
    %v1069 = vld [vmem:[#allocation10 + $0xdb8] sm:$0xff]
    %v1070 = vld [vmem:[#allocation10 + $0xdc0] sm:$0xff]
    %v1071 = vld [vmem:[#allocation10 + $0xdc8] sm:$0xff]
    %v1072 = vld [vmem:[#allocation10 + $0xdd0] sm:$0xff]
    %v1073 = vld [vmem:[#allocation10 + $0xdd8] sm:$0xff]
    %v1074 = vld [vmem:[#allocation10 + $0xde0] sm:$0xff]
    %v1075 = vld [vmem:[#allocation10 + $0xde8] sm:$0xff]
    %v1076 = vld [vmem:[#allocation10 + $0xdf0] sm:$0xff]
    %v1077 = vld [vmem:[#allocation10 + $0xdf8] sm:$0xff]
    %v1078 = vld [vmem:[#allocation10 + $0xe00] sm:$0xff]
    %v1079 = vld [vmem:[#allocation10 + $0xe08] sm:$0xff]
    %v1080 = vld [vmem:[#allocation10 + $0xe10] sm:$0xff]
    %v1081 = vld [vmem:[#allocation10 + $0xe18] sm:$0xff]
    %v1082 = vld [vmem:[#allocation10 + $0xe20] sm:$0xff]
    %v1083 = vld [vmem:[#allocation10 + $0xe28] sm:$0xff]
    %v1084 = vld [vmem:[#allocation10 + $0xe30] sm:$0xff]
    %v1085 = vld [vmem:[#allocation10 + $0xe38] sm:$0xff]
    %v1086 = vld [vmem:[#allocation10 + $0xe40] sm:$0xff]
    %v1087 = vld [vmem:[#allocation10 + $0xe48] sm:$0xff]
    %v1088 = vld [vmem:[#allocation10 + $0xe50] sm:$0xff]
    %v1089 = vld [vmem:[#allocation10 + $0xe58] sm:$0xff]
    %v1090 = vld [vmem:[#allocation10 + $0xe60] sm:$0xff]
    %v1091 = vld [vmem:[#allocation10 + $0xe68] sm:$0xff]
    %v1092 = vld [vmem:[#allocation10 + $0xe70] sm:$0xff]
    %v1093 = vld [vmem:[#allocation10 + $0xe78] sm:$0xff]
    %v1094 = vld [vmem:[#allocation10 + $0xe80] sm:$0xff]
    %v1095 = vld [vmem:[#allocation10 + $0xe88] sm:$0xff]
    %v1096 = vld [vmem:[#allocation10 + $0xe90] sm:$0xff]
    %v1097 = vld [vmem:[#allocation10 + $0xe98] sm:$0xff]
    %v1098 = vld [vmem:[#allocation10 + $0xea0] sm:$0xff]
    %v1099 = vld [vmem:[#allocation10 + $0xea8] sm:$0xff]
    %v1100 = vld [vmem:[#allocation10 + $0xeb0] sm:$0xff]
    %v1101 = vld [vmem:[#allocation10 + $0xeb8] sm:$0xff]
    %v1102 = vld [vmem:[#allocation10 + $0xec0] sm:$0xff]
    %v1103 = vld [vmem:[#allocation10 + $0xec8] sm:$0xff]
    %v1104 = vld [vmem:[#allocation10 + $0xed0] sm:$0xff]
    %v1105 = vld [vmem:[#allocation10 + $0xed8] sm:$0xff]
    %v1106 = vld [vmem:[#allocation10 + $0xee0] sm:$0xff]
    %v1107 = vld [vmem:[#allocation10 + $0xee8] sm:$0xff]
    %v1108 = vld [vmem:[#allocation10 + $0xef0] sm:$0xff]
    %v1109 = vld [vmem:[#allocation10 + $0xef8] sm:$0xff]
    %v1110 = vld [vmem:[#allocation10 + $0xf00] sm:$0xff]
    %v1111 = vld [vmem:[#allocation10 + $0xf08] sm:$0xff]
    %v1112 = vld [vmem:[#allocation10 + $0xf10] sm:$0xff]
    %v1113 = vld [vmem:[#allocation10 + $0xf18] sm:$0xff]
    %v1114 = vld [vmem:[#allocation10 + $0xf20] sm:$0xff]
    %v1115 = vld [vmem:[#allocation10 + $0xf28] sm:$0xff]
    %v1116 = vld [vmem:[#allocation10 + $0xf30] sm:$0xff]
    %v1117 = vld [vmem:[#allocation10 + $0xf38] sm:$0xff]
    %v1118 = vld [vmem:[#allocation10 + $0xf40] sm:$0xff]
    %v1119 = vld [vmem:[#allocation10 + $0xf48] sm:$0xff]
    %v1120 = vld [vmem:[#allocation10 + $0xf50] sm:$0xff]
    %v1121 = vld [vmem:[#allocation10 + $0xf58] sm:$0xff]
    %v1122 = vld [vmem:[#allocation10 + $0xf60] sm:$0xff]
    %v1123 = vld [vmem:[#allocation10 + $0xf68] sm:$0xff]
    %v1124 = vld [vmem:[#allocation10 + $0xf70] sm:$0xff]
    %v1125 = vld [vmem:[#allocation10 + $0xf78] sm:$0xff]
    %v1126 = vld [vmem:[#allocation10 + $0xf80] sm:$0xff]
    %v1127 = vld [vmem:[#allocation10 + $0xf88] sm:$0xff]
    %v1128 = vld [vmem:[#allocation10 + $0xf90] sm:$0xff]
    %v1129 = vld [vmem:[#allocation10 + $0xf98] sm:$0xff]
    %v1130 = vld [vmem:[#allocation10 + $0xfa0] sm:$0xff]
    %v1131 = vld [vmem:[#allocation10 + $0xfa8] sm:$0xff]
    %v1132 = vld [vmem:[#allocation10 + $0xfb0] sm:$0xff]
    %v1133 = vld [vmem:[#allocation10 + $0xfb8] sm:$0xff]
    %v1134 = vld [vmem:[#allocation10 + $0xfc0] sm:$0xff]
    %v1135 = vld [vmem:[#allocation10 + $0xfc8] sm:$0xff]
    %v1136 = vld [vmem:[#allocation10 + $0xfd0] sm:$0xff]
    %v1137 = vld [vmem:[#allocation10 + $0xfd8] sm:$0xff]
    %v1138 = vld [vmem:[#allocation10 + $0xfe0] sm:$0xff]
    %v1139 = vld [vmem:[#allocation10 + $0xfe8] sm:$0xff]
    %v1140 = vld [vmem:[#allocation10 + $0xff0] sm:$0xff]
    %v1141 = vld [vmem:[#allocation10 + $0xff8] sm:$0xff]
    %1142 = vmatpush.msra.mxu0 %v660
    %1143 = vmatpush.msra.mxu0 %v658
    %1144 = vmatpush.msra.mxu0 %v656
    %1145 = vmatpush.msra.mxu0 %v654
    %1146 = vmatpush.msra.mxu0 %v652
    %1147 = vmatpush.msra.mxu0 %v650
    %1148 = vmatpush.msra.mxu0 %v648
    %1149 = vmatpush.msra.mxu0 %v646
    %1150 = vmatpush.msra.mxu0 %v644
    %1151 = vmatpush.msra.mxu0 %v642
    %1152 = vmatpush.msra.mxu0 %v640
    %1153 = vmatpush.msra.mxu0 %v638
    %1154 = vmatpush.msra.mxu0 %v636
    %1155 = vmatpush.msra.mxu0 %v634
    %1156 = vmatpush.msra.mxu0 %v632
    %1157 = vmatpush.msra.mxu0 %v630
    %1158 = vmatmul.f32.gmra.mxu0 %v598
    %v1159 = vpop.f32.mrf.mxu0
    %v1160 = vadd.f32 0.0, %v1159
    %1161 = vmatmul.f32.gmra.mxu0 %v614
    %v1162 = vpop.f32.mrf.mxu0
    %v1163 = vadd.f32 0.0, %v1162
    %1164 = vdwg.mxu0
    %1165 = vmatpush.msra.mxu0 %v692
    %1166 = vmatpush.msra.mxu0 %v690
    %1167 = vmatpush.msra.mxu0 %v688
    %1168 = vmatpush.msra.mxu0 %v686
    %1169 = vmatpush.msra.mxu0 %v684
    %1170 = vmatpush.msra.mxu0 %v682
    %1171 = vmatpush.msra.mxu0 %v680
    %1172 = vmatpush.msra.mxu0 %v678
    %1173 = vmatpush.msra.mxu0 %v676
    %1174 = vmatpush.msra.mxu0 %v674
    %1175 = vmatpush.msra.mxu0 %v672
    %1176 = vmatpush.msra.mxu0 %v670
    %1177 = vmatpush.msra.mxu0 %v668
    %1178 = vmatpush.msra.mxu0 %v666
    %1179 = vmatpush.msra.mxu0 %v664
    %1180 = vmatpush.msra.mxu0 %v662
    %1181 = vmatmul.f32.gmra.mxu0 %v599
    %v1182 = vpop.f32.mrf.mxu0
    %v1183 = vadd.f32 %v1160, %v1182
    %1184 = vmatmul.f32.gmra.mxu0 %v615
    %v1185 = vpop.f32.mrf.mxu0
    %v1186 = vadd.f32 %v1163, %v1185
    %1187 = vdwg.mxu0
    %1188 = vmatpush.msra.mxu0 %v724
    %1189 = vmatpush.msra.mxu0 %v722
    %1190 = vmatpush.msra.mxu0 %v720
    %1191 = vmatpush.msra.mxu0 %v718
    %1192 = vmatpush.msra.mxu0 %v716
    %1193 = vmatpush.msra.mxu0 %v714
    %1194 = vmatpush.msra.mxu0 %v712
    %1195 = vmatpush.msra.mxu0 %v710
    %1196 = vmatpush.msra.mxu0 %v708
    %1197 = vmatpush.msra.mxu0 %v706
    %1198 = vmatpush.msra.mxu0 %v704
    %1199 = vmatpush.msra.mxu0 %v702
    %1200 = vmatpush.msra.mxu0 %v700
    %1201 = vmatpush.msra.mxu0 %v698
    %1202 = vmatpush.msra.mxu0 %v696
    %1203 = vmatpush.msra.mxu0 %v694
    %1204 = vmatmul.f32.gmra.mxu0 %v600
    %v1205 = vpop.f32.mrf.mxu0
    %v1206 = vadd.f32 %v1183, %v1205
    %1207 = vmatmul.f32.gmra.mxu0 %v616
    %v1208 = vpop.f32.mrf.mxu0
    %v1209 = vadd.f32 %v1186, %v1208
    %1210 = vdwg.mxu0
    %1211 = vmatpush.msra.mxu0 %v756
    %1212 = vmatpush.msra.mxu0 %v754
    %1213 = vmatpush.msra.mxu0 %v752
    %1214 = vmatpush.msra.mxu0 %v750
    %1215 = vmatpush.msra.mxu0 %v748
    %1216 = vmatpush.msra.mxu0 %v746
    %1217 = vmatpush.msra.mxu0 %v744
    %1218 = vmatpush.msra.mxu0 %v742
    %1219 = vmatpush.msra.mxu0 %v740
    %1220 = vmatpush.msra.mxu0 %v738
    %1221 = vmatpush.msra.mxu0 %v736
    %1222 = vmatpush.msra.mxu0 %v734
    %1223 = vmatpush.msra.mxu0 %v732
    %1224 = vmatpush.msra.mxu0 %v730
    %1225 = vmatpush.msra.mxu0 %v728
    %1226 = vmatpush.msra.mxu0 %v726
    %1227 = vmatmul.f32.gmra.mxu0 %v601
    %v1228 = vpop.f32.mrf.mxu0
    %v1229 = vadd.f32 %v1206, %v1228
    %1230 = vmatmul.f32.gmra.mxu0 %v617
    %v1231 = vpop.f32.mrf.mxu0
    %v1232 = vadd.f32 %v1209, %v1231
    %1233 = vdwg.mxu0
    %1234 = vmatpush.msra.mxu0 %v788
    %1235 = vmatpush.msra.mxu0 %v786
    %1236 = vmatpush.msra.mxu0 %v784
    %1237 = vmatpush.msra.mxu0 %v782
    %1238 = vmatpush.msra.mxu0 %v780
    %1239 = vmatpush.msra.mxu0 %v778
    %1240 = vmatpush.msra.mxu0 %v776
    %1241 = vmatpush.msra.mxu0 %v774
    %1242 = vmatpush.msra.mxu0 %v772
    %1243 = vmatpush.msra.mxu0 %v770
    %1244 = vmatpush.msra.mxu0 %v768
    %1245 = vmatpush.msra.mxu0 %v766
    %1246 = vmatpush.msra.mxu0 %v764
    %1247 = vmatpush.msra.mxu0 %v762
    %1248 = vmatpush.msra.mxu0 %v760
    %1249 = vmatpush.msra.mxu0 %v758
    %1250 = vmatmul.f32.gmra.mxu0 %v602
    %v1251 = vpop.f32.mrf.mxu0
    %v1252 = vadd.f32 %v1229, %v1251
    %1253 = vmatmul.f32.gmra.mxu0 %v618
    %v1254 = vpop.f32.mrf.mxu0
    %v1255 = vadd.f32 %v1232, %v1254
    %1256 = vdwg.mxu0
    %1257 = vmatpush.msra.mxu0 %v820
    %1258 = vmatpush.msra.mxu0 %v818
    %1259 = vmatpush.msra.mxu0 %v816
    %1260 = vmatpush.msra.mxu0 %v814
    %1261 = vmatpush.msra.mxu0 %v812
    %1262 = vmatpush.msra.mxu0 %v810
    %1263 = vmatpush.msra.mxu0 %v808
    %1264 = vmatpush.msra.mxu0 %v806
    %1265 = vmatpush.msra.mxu0 %v804
    %1266 = vmatpush.msra.mxu0 %v802
    %1267 = vmatpush.msra.mxu0 %v800
    %1268 = vmatpush.msra.mxu0 %v798
    %1269 = vmatpush.msra.mxu0 %v796
    %1270 = vmatpush.msra.mxu0 %v794
    %1271 = vmatpush.msra.mxu0 %v792
    %1272 = vmatpush.msra.mxu0 %v790
    %1273 = vmatmul.f32.gmra.mxu0 %v603
    %v1274 = vpop.f32.mrf.mxu0
    %v1275 = vadd.f32 %v1252, %v1274
    %1276 = vmatmul.f32.gmra.mxu0 %v619
    %v1277 = vpop.f32.mrf.mxu0
    %v1278 = vadd.f32 %v1255, %v1277
    %1279 = vdwg.mxu0
    %1280 = vmatpush.msra.mxu0 %v852
    %1281 = vmatpush.msra.mxu0 %v850
    %1282 = vmatpush.msra.mxu0 %v848
    %1283 = vmatpush.msra.mxu0 %v846
    %1284 = vmatpush.msra.mxu0 %v844
    %1285 = vmatpush.msra.mxu0 %v842
    %1286 = vmatpush.msra.mxu0 %v840
    %1287 = vmatpush.msra.mxu0 %v838
    %1288 = vmatpush.msra.mxu0 %v836
    %1289 = vmatpush.msra.mxu0 %v834
    %1290 = vmatpush.msra.mxu0 %v832
    %1291 = vmatpush.msra.mxu0 %v830
    %1292 = vmatpush.msra.mxu0 %v828
    %1293 = vmatpush.msra.mxu0 %v826
    %1294 = vmatpush.msra.mxu0 %v824
    %1295 = vmatpush.msra.mxu0 %v822
    %1296 = vmatmul.f32.gmra.mxu0 %v604
    %v1297 = vpop.f32.mrf.mxu0
    %v1298 = vadd.f32 %v1275, %v1297
    %1299 = vmatmul.f32.gmra.mxu0 %v620
    %v1300 = vpop.f32.mrf.mxu0
    %v1301 = vadd.f32 %v1278, %v1300
    %1302 = vdwg.mxu0
    %1303 = vmatpush.msra.mxu0 %v884
    %1304 = vmatpush.msra.mxu0 %v882
    %1305 = vmatpush.msra.mxu0 %v880
    %1306 = vmatpush.msra.mxu0 %v878
    %1307 = vmatpush.msra.mxu0 %v876
    %1308 = vmatpush.msra.mxu0 %v874
    %1309 = vmatpush.msra.mxu0 %v872
    %1310 = vmatpush.msra.mxu0 %v870
    %1311 = vmatpush.msra.mxu0 %v868
    %1312 = vmatpush.msra.mxu0 %v866
    %1313 = vmatpush.msra.mxu0 %v864
    %1314 = vmatpush.msra.mxu0 %v862
    %1315 = vmatpush.msra.mxu0 %v860
    %1316 = vmatpush.msra.mxu0 %v858
    %1317 = vmatpush.msra.mxu0 %v856
    %1318 = vmatpush.msra.mxu0 %v854
    %1319 = vmatmul.f32.gmra.mxu0 %v605
    %v1320 = vpop.f32.mrf.mxu0
    %v1321 = vadd.f32 %v1298, %v1320
    %1322 = vmatmul.f32.gmra.mxu0 %v621
    %v1323 = vpop.f32.mrf.mxu0
    %v1324 = vadd.f32 %v1301, %v1323
    %1325 = vdwg.mxu0
    %1326 = vmatpush.msra.mxu0 %v916
    %1327 = vmatpush.msra.mxu0 %v914
    %1328 = vmatpush.msra.mxu0 %v912
    %1329 = vmatpush.msra.mxu0 %v910
    %1330 = vmatpush.msra.mxu0 %v908
    %1331 = vmatpush.msra.mxu0 %v906
    %1332 = vmatpush.msra.mxu0 %v904
    %1333 = vmatpush.msra.mxu0 %v902
    %1334 = vmatpush.msra.mxu0 %v900
    %1335 = vmatpush.msra.mxu0 %v898
    %1336 = vmatpush.msra.mxu0 %v896
    %1337 = vmatpush.msra.mxu0 %v894
    %1338 = vmatpush.msra.mxu0 %v892
    %1339 = vmatpush.msra.mxu0 %v890
    %1340 = vmatpush.msra.mxu0 %v888
    %1341 = vmatpush.msra.mxu0 %v886
    %1342 = vmatmul.f32.gmra.mxu0 %v606
    %v1343 = vpop.f32.mrf.mxu0
    %v1344 = vadd.f32 %v1321, %v1343
    %1345 = vmatmul.f32.gmra.mxu0 %v622
    %v1346 = vpop.f32.mrf.mxu0
    %v1347 = vadd.f32 %v1324, %v1346
    %1348 = vdwg.mxu0
    %1349 = vmatpush.msra.mxu0 %v948
    %1350 = vmatpush.msra.mxu0 %v946
    %1351 = vmatpush.msra.mxu0 %v944
    %1352 = vmatpush.msra.mxu0 %v942
    %1353 = vmatpush.msra.mxu0 %v940
    %1354 = vmatpush.msra.mxu0 %v938
    %1355 = vmatpush.msra.mxu0 %v936
    %1356 = vmatpush.msra.mxu0 %v934
    %1357 = vmatpush.msra.mxu0 %v932
    %1358 = vmatpush.msra.mxu0 %v930
    %1359 = vmatpush.msra.mxu0 %v928
    %1360 = vmatpush.msra.mxu0 %v926
    %1361 = vmatpush.msra.mxu0 %v924
    %1362 = vmatpush.msra.mxu0 %v922
    %1363 = vmatpush.msra.mxu0 %v920
    %1364 = vmatpush.msra.mxu0 %v918
    %1365 = vmatmul.f32.gmra.mxu0 %v607
    %v1366 = vpop.f32.mrf.mxu0
    %v1367 = vadd.f32 %v1344, %v1366
    %1368 = vmatmul.f32.gmra.mxu0 %v623
    %v1369 = vpop.f32.mrf.mxu0
    %v1370 = vadd.f32 %v1347, %v1369
    %1371 = vdwg.mxu0
    %1372 = vmatpush.msra.mxu0 %v980
    %1373 = vmatpush.msra.mxu0 %v978
    %1374 = vmatpush.msra.mxu0 %v976
    %1375 = vmatpush.msra.mxu0 %v974
    %1376 = vmatpush.msra.mxu0 %v972
    %1377 = vmatpush.msra.mxu0 %v970
    %1378 = vmatpush.msra.mxu0 %v968
    %1379 = vmatpush.msra.mxu0 %v966
    %1380 = vmatpush.msra.mxu0 %v964
    %1381 = vmatpush.msra.mxu0 %v962
    %1382 = vmatpush.msra.mxu0 %v960
    %1383 = vmatpush.msra.mxu0 %v958
    %1384 = vmatpush.msra.mxu0 %v956
    %1385 = vmatpush.msra.mxu0 %v954
    %1386 = vmatpush.msra.mxu0 %v952
    %1387 = vmatpush.msra.mxu0 %v950
    %1388 = vmatmul.f32.gmra.mxu0 %v608
    %v1389 = vpop.f32.mrf.mxu0
    %v1390 = vadd.f32 %v1367, %v1389
    %1391 = vmatmul.f32.gmra.mxu0 %v624
    %v1392 = vpop.f32.mrf.mxu0
    %v1393 = vadd.f32 %v1370, %v1392
    %1394 = vdwg.mxu0
    %1395 = vmatpush.msra.mxu0 %v1012
    %1396 = vmatpush.msra.mxu0 %v1010
    %1397 = vmatpush.msra.mxu0 %v1008
    %1398 = vmatpush.msra.mxu0 %v1006
    %1399 = vmatpush.msra.mxu0 %v1004
    %1400 = vmatpush.msra.mxu0 %v1002
    %1401 = vmatpush.msra.mxu0 %v1000
    %1402 = vmatpush.msra.mxu0 %v998
    %1403 = vmatpush.msra.mxu0 %v996
    %1404 = vmatpush.msra.mxu0 %v994
    %1405 = vmatpush.msra.mxu0 %v992
    %1406 = vmatpush.msra.mxu0 %v990
    %1407 = vmatpush.msra.mxu0 %v988
    %1408 = vmatpush.msra.mxu0 %v986
    %1409 = vmatpush.msra.mxu0 %v984
    %1410 = vmatpush.msra.mxu0 %v982
    %1411 = vmatmul.f32.gmra.mxu0 %v609
    %v1412 = vpop.f32.mrf.mxu0
    %v1413 = vadd.f32 %v1390, %v1412
    %1414 = vmatmul.f32.gmra.mxu0 %v625
    %v1415 = vpop.f32.mrf.mxu0
    %v1416 = vadd.f32 %v1393, %v1415
    %1417 = vdwg.mxu0
    %1418 = vmatpush.msra.mxu0 %v1044
    %1419 = vmatpush.msra.mxu0 %v1042
    %1420 = vmatpush.msra.mxu0 %v1040
    %1421 = vmatpush.msra.mxu0 %v1038
    %1422 = vmatpush.msra.mxu0 %v1036
    %1423 = vmatpush.msra.mxu0 %v1034
    %1424 = vmatpush.msra.mxu0 %v1032
    %1425 = vmatpush.msra.mxu0 %v1030
    %1426 = vmatpush.msra.mxu0 %v1028
    %1427 = vmatpush.msra.mxu0 %v1026
    %1428 = vmatpush.msra.mxu0 %v1024
    %1429 = vmatpush.msra.mxu0 %v1022
    %1430 = vmatpush.msra.mxu0 %v1020
    %1431 = vmatpush.msra.mxu0 %v1018
    %1432 = vmatpush.msra.mxu0 %v1016
    %1433 = vmatpush.msra.mxu0 %v1014
    %1434 = vmatmul.f32.gmra.mxu0 %v610
    %v1435 = vpop.f32.mrf.mxu0
    %v1436 = vadd.f32 %v1413, %v1435
    %1437 = vmatmul.f32.gmra.mxu0 %v626
    %v1438 = vpop.f32.mrf.mxu0
    %v1439 = vadd.f32 %v1416, %v1438
    %1440 = vdwg.mxu0
    %1441 = vmatpush.msra.mxu0 %v1076
    %1442 = vmatpush.msra.mxu0 %v1074
    %1443 = vmatpush.msra.mxu0 %v1072
    %1444 = vmatpush.msra.mxu0 %v1070
    %1445 = vmatpush.msra.mxu0 %v1068
    %1446 = vmatpush.msra.mxu0 %v1066
    %1447 = vmatpush.msra.mxu0 %v1064
    %1448 = vmatpush.msra.mxu0 %v1062
    %1449 = vmatpush.msra.mxu0 %v1060
    %1450 = vmatpush.msra.mxu0 %v1058
    %1451 = vmatpush.msra.mxu0 %v1056
    %1452 = vmatpush.msra.mxu0 %v1054
    %1453 = vmatpush.msra.mxu0 %v1052
    %1454 = vmatpush.msra.mxu0 %v1050
    %1455 = vmatpush.msra.mxu0 %v1048
    %1456 = vmatpush.msra.mxu0 %v1046
    %1457 = vmatmul.f32.gmra.mxu0 %v611
    %v1458 = vpop.f32.mrf.mxu0
    %v1459 = vadd.f32 %v1436, %v1458
    %1460 = vmatmul.f32.gmra.mxu0 %v627
    %v1461 = vpop.f32.mrf.mxu0
    %v1462 = vadd.f32 %v1439, %v1461
    %1463 = vdwg.mxu0
    %1464 = vmatpush.msra.mxu0 %v1108
    %1465 = vmatpush.msra.mxu0 %v1106
    %1466 = vmatpush.msra.mxu0 %v1104
    %1467 = vmatpush.msra.mxu0 %v1102
    %1468 = vmatpush.msra.mxu0 %v1100
    %1469 = vmatpush.msra.mxu0 %v1098
    %1470 = vmatpush.msra.mxu0 %v1096
    %1471 = vmatpush.msra.mxu0 %v1094
    %1472 = vmatpush.msra.mxu0 %v1092
    %1473 = vmatpush.msra.mxu0 %v1090
    %1474 = vmatpush.msra.mxu0 %v1088
    %1475 = vmatpush.msra.mxu0 %v1086
    %1476 = vmatpush.msra.mxu0 %v1084
    %1477 = vmatpush.msra.mxu0 %v1082
    %1478 = vmatpush.msra.mxu0 %v1080
    %1479 = vmatpush.msra.mxu0 %v1078
    %1480 = vmatmul.f32.gmra.mxu0 %v612
    %v1481 = vpop.f32.mrf.mxu0
    %v1482 = vadd.f32 %v1459, %v1481
    %1483 = vmatmul.f32.gmra.mxu0 %v628
    %v1484 = vpop.f32.mrf.mxu0
    %v1485 = vadd.f32 %v1462, %v1484
    %1486 = vdwg.mxu0
    %1487 = vmatpush.msra.mxu0 %v1140
    %1488 = vmatpush.msra.mxu0 %v1138
    %1489 = vmatpush.msra.mxu0 %v1136
    %1490 = vmatpush.msra.mxu0 %v1134
    %1491 = vmatpush.msra.mxu0 %v1132
    %1492 = vmatpush.msra.mxu0 %v1130
    %1493 = vmatpush.msra.mxu0 %v1128
    %1494 = vmatpush.msra.mxu0 %v1126
    %1495 = vmatpush.msra.mxu0 %v1124
    %1496 = vmatpush.msra.mxu0 %v1122
    %1497 = vmatpush.msra.mxu0 %v1120
    %1498 = vmatpush.msra.mxu0 %v1118
    %1499 = vmatpush.msra.mxu0 %v1116
    %1500 = vmatpush.msra.mxu0 %v1114
    %1501 = vmatpush.msra.mxu0 %v1112
    %1502 = vmatpush.msra.mxu0 %v1110
    %1503 = vmatmul.f32.gmra.mxu0 %v613
    %v1504 = vpop.f32.mrf.mxu0
    %v1505 = vadd.f32 %v1482, %v1504
    %1506 = vmatmul.f32.gmra.mxu0 %v629
    %v1507 = vpop.f32.mrf.mxu0
    %v1508 = vadd.f32 %v1485, %v1507
    %1509 = vdwg.mxu0
    %1510 = vmatpush.msra.mxu0 %v661
    %1511 = vmatpush.msra.mxu0 %v659
    %1512 = vmatpush.msra.mxu0 %v657
    %1513 = vmatpush.msra.mxu0 %v655
    %1514 = vmatpush.msra.mxu0 %v653
    %1515 = vmatpush.msra.mxu0 %v651
    %1516 = vmatpush.msra.mxu0 %v649
    %1517 = vmatpush.msra.mxu0 %v647
    %1518 = vmatpush.msra.mxu0 %v645
    %1519 = vmatpush.msra.mxu0 %v643
    %1520 = vmatpush.msra.mxu0 %v641
    %1521 = vmatpush.msra.mxu0 %v639
    %1522 = vmatpush.msra.mxu0 %v637
    %1523 = vmatpush.msra.mxu0 %v635
    %1524 = vmatpush.msra.mxu0 %v633
    %1525 = vmatpush.msra.mxu0 %v631
    %1526 = vmatmul.f32.gmra.mxu0 %v598
    %v1527 = vpop.f32.mrf.mxu0
    %v1528 = vadd.f32 0.0, %v1527
    %1529 = vmatmul.f32.gmra.mxu0 %v614
    %v1530 = vpop.f32.mrf.mxu0
    %v1531 = vadd.f32 0.0, %v1530
    %1532 = vdwg.mxu0
    %1533 = vmatpush.msra.mxu0 %v693
    %1534 = vmatpush.msra.mxu0 %v691
    %1535 = vmatpush.msra.mxu0 %v689
    %1536 = vmatpush.msra.mxu0 %v687
    %1537 = vmatpush.msra.mxu0 %v685
    %1538 = vmatpush.msra.mxu0 %v683
    %1539 = vmatpush.msra.mxu0 %v681
    %1540 = vmatpush.msra.mxu0 %v679
    %1541 = vmatpush.msra.mxu0 %v677
    %1542 = vmatpush.msra.mxu0 %v675
    %1543 = vmatpush.msra.mxu0 %v673
    %1544 = vmatpush.msra.mxu0 %v671
    %1545 = vmatpush.msra.mxu0 %v669
    %1546 = vmatpush.msra.mxu0 %v667
    %1547 = vmatpush.msra.mxu0 %v665
    %1548 = vmatpush.msra.mxu0 %v663
    %1549 = vmatmul.f32.gmra.mxu0 %v599
    %v1550 = vpop.f32.mrf.mxu0
    %v1551 = vadd.f32 %v1528, %v1550
    %1552 = vmatmul.f32.gmra.mxu0 %v615
    %v1553 = vpop.f32.mrf.mxu0
    %v1554 = vadd.f32 %v1531, %v1553
    %1555 = vdwg.mxu0
    %1556 = vmatpush.msra.mxu0 %v725
    %1557 = vmatpush.msra.mxu0 %v723
    %1558 = vmatpush.msra.mxu0 %v721
    %1559 = vmatpush.msra.mxu0 %v719
    %1560 = vmatpush.msra.mxu0 %v717
    %1561 = vmatpush.msra.mxu0 %v715
    %1562 = vmatpush.msra.mxu0 %v713
    %1563 = vmatpush.msra.mxu0 %v711
    %1564 = vmatpush.msra.mxu0 %v709
    %1565 = vmatpush.msra.mxu0 %v707
    %1566 = vmatpush.msra.mxu0 %v705
    %1567 = vmatpush.msra.mxu0 %v703
    %1568 = vmatpush.msra.mxu0 %v701
    %1569 = vmatpush.msra.mxu0 %v699
    %1570 = vmatpush.msra.mxu0 %v697
    %1571 = vmatpush.msra.mxu0 %v695
    %1572 = vmatmul.f32.gmra.mxu0 %v600
    %v1573 = vpop.f32.mrf.mxu0
    %v1574 = vadd.f32 %v1551, %v1573
    %1575 = vmatmul.f32.gmra.mxu0 %v616
    %v1576 = vpop.f32.mrf.mxu0
    %v1577 = vadd.f32 %v1554, %v1576
    %1578 = vdwg.mxu0
    %1579 = vmatpush.msra.mxu0 %v757
    %1580 = vmatpush.msra.mxu0 %v755
    %1581 = vmatpush.msra.mxu0 %v753
    %1582 = vmatpush.msra.mxu0 %v751
    %1583 = vmatpush.msra.mxu0 %v749
    %1584 = vmatpush.msra.mxu0 %v747
    %1585 = vmatpush.msra.mxu0 %v745
    %1586 = vmatpush.msra.mxu0 %v743
    %1587 = vmatpush.msra.mxu0 %v741
    %1588 = vmatpush.msra.mxu0 %v739
    %1589 = vmatpush.msra.mxu0 %v737
    %1590 = vmatpush.msra.mxu0 %v735
    %1591 = vmatpush.msra.mxu0 %v733
    %1592 = vmatpush.msra.mxu0 %v731
    %1593 = vmatpush.msra.mxu0 %v729
    %1594 = vmatpush.msra.mxu0 %v727
    %1595 = vmatmul.f32.gmra.mxu0 %v601
    %v1596 = vpop.f32.mrf.mxu0
    %v1597 = vadd.f32 %v1574, %v1596
    %1598 = vmatmul.f32.gmra.mxu0 %v617
    %v1599 = vpop.f32.mrf.mxu0
    %v1600 = vadd.f32 %v1577, %v1599
    %1601 = vdwg.mxu0
    %1602 = vmatpush.msra.mxu0 %v789
    %1603 = vmatpush.msra.mxu0 %v787
    %1604 = vmatpush.msra.mxu0 %v785
    %1605 = vmatpush.msra.mxu0 %v783
    %1606 = vmatpush.msra.mxu0 %v781
    %1607 = vmatpush.msra.mxu0 %v779
    %1608 = vmatpush.msra.mxu0 %v777
    %1609 = vmatpush.msra.mxu0 %v775
    %1610 = vmatpush.msra.mxu0 %v773
    %1611 = vmatpush.msra.mxu0 %v771
    %1612 = vmatpush.msra.mxu0 %v769
    %1613 = vmatpush.msra.mxu0 %v767
    %1614 = vmatpush.msra.mxu0 %v765
    %1615 = vmatpush.msra.mxu0 %v763
    %1616 = vmatpush.msra.mxu0 %v761
    %1617 = vmatpush.msra.mxu0 %v759
    %1618 = vmatmul.f32.gmra.mxu0 %v602
    %v1619 = vpop.f32.mrf.mxu0
    %v1620 = vadd.f32 %v1597, %v1619
    %1621 = vmatmul.f32.gmra.mxu0 %v618
    %v1622 = vpop.f32.mrf.mxu0
    %v1623 = vadd.f32 %v1600, %v1622
    %1624 = vdwg.mxu0
    %1625 = vmatpush.msra.mxu0 %v821
    %1626 = vmatpush.msra.mxu0 %v819
    %1627 = vmatpush.msra.mxu0 %v817
    %1628 = vmatpush.msra.mxu0 %v815
    %1629 = vmatpush.msra.mxu0 %v813
    %1630 = vmatpush.msra.mxu0 %v811
    %1631 = vmatpush.msra.mxu0 %v809
    %1632 = vmatpush.msra.mxu0 %v807
    %1633 = vmatpush.msra.mxu0 %v805
    %1634 = vmatpush.msra.mxu0 %v803
    %1635 = vmatpush.msra.mxu0 %v801
    %1636 = vmatpush.msra.mxu0 %v799
    %1637 = vmatpush.msra.mxu0 %v797
    %1638 = vmatpush.msra.mxu0 %v795
    %1639 = vmatpush.msra.mxu0 %v793
    %1640 = vmatpush.msra.mxu0 %v791
    %1641 = vmatmul.f32.gmra.mxu0 %v603
    %v1642 = vpop.f32.mrf.mxu0
    %v1643 = vadd.f32 %v1620, %v1642
    %1644 = vmatmul.f32.gmra.mxu0 %v619
    %v1645 = vpop.f32.mrf.mxu0
    %v1646 = vadd.f32 %v1623, %v1645
    %1647 = vdwg.mxu0
    %1648 = vmatpush.msra.mxu0 %v853
    %1649 = vmatpush.msra.mxu0 %v851
    %1650 = vmatpush.msra.mxu0 %v849
    %1651 = vmatpush.msra.mxu0 %v847
    %1652 = vmatpush.msra.mxu0 %v845
    %1653 = vmatpush.msra.mxu0 %v843
    %1654 = vmatpush.msra.mxu0 %v841
    %1655 = vmatpush.msra.mxu0 %v839
    %1656 = vmatpush.msra.mxu0 %v837
    %1657 = vmatpush.msra.mxu0 %v835
    %1658 = vmatpush.msra.mxu0 %v833
    %1659 = vmatpush.msra.mxu0 %v831
    %1660 = vmatpush.msra.mxu0 %v829
    %1661 = vmatpush.msra.mxu0 %v827
    %1662 = vmatpush.msra.mxu0 %v825
    %1663 = vmatpush.msra.mxu0 %v823
    %1664 = vmatmul.f32.gmra.mxu0 %v604
    %v1665 = vpop.f32.mrf.mxu0
    %v1666 = vadd.f32 %v1643, %v1665
    %1667 = vmatmul.f32.gmra.mxu0 %v620
    %v1668 = vpop.f32.mrf.mxu0
    %v1669 = vadd.f32 %v1646, %v1668
    %1670 = vdwg.mxu0
    %1671 = vmatpush.msra.mxu0 %v885
    %1672 = vmatpush.msra.mxu0 %v883
    %1673 = vmatpush.msra.mxu0 %v881
    %1674 = vmatpush.msra.mxu0 %v879
    %1675 = vmatpush.msra.mxu0 %v877
    %1676 = vmatpush.msra.mxu0 %v875
    %1677 = vmatpush.msra.mxu0 %v873
    %1678 = vmatpush.msra.mxu0 %v871
    %1679 = vmatpush.msra.mxu0 %v869
    %1680 = vmatpush.msra.mxu0 %v867
    %1681 = vmatpush.msra.mxu0 %v865
    %1682 = vmatpush.msra.mxu0 %v863
    %1683 = vmatpush.msra.mxu0 %v861
    %1684 = vmatpush.msra.mxu0 %v859
    %1685 = vmatpush.msra.mxu0 %v857
    %1686 = vmatpush.msra.mxu0 %v855
    %1687 = vmatmul.f32.gmra.mxu0 %v605
    %v1688 = vpop.f32.mrf.mxu0
    %v1689 = vadd.f32 %v1666, %v1688
    %1690 = vmatmul.f32.gmra.mxu0 %v621
    %v1691 = vpop.f32.mrf.mxu0
    %v1692 = vadd.f32 %v1669, %v1691
    %1693 = vdwg.mxu0
    %1694 = vmatpush.msra.mxu0 %v917
    %1695 = vmatpush.msra.mxu0 %v915
    %1696 = vmatpush.msra.mxu0 %v913
    %1697 = vmatpush.msra.mxu0 %v911
    %1698 = vmatpush.msra.mxu0 %v909
    %1699 = vmatpush.msra.mxu0 %v907
    %1700 = vmatpush.msra.mxu0 %v905
    %1701 = vmatpush.msra.mxu0 %v903
    %1702 = vmatpush.msra.mxu0 %v901
    %1703 = vmatpush.msra.mxu0 %v899
    %1704 = vmatpush.msra.mxu0 %v897
    %1705 = vmatpush.msra.mxu0 %v895
    %1706 = vmatpush.msra.mxu0 %v893
    %1707 = vmatpush.msra.mxu0 %v891
    %1708 = vmatpush.msra.mxu0 %v889
    %1709 = vmatpush.msra.mxu0 %v887
    %1710 = vmatmul.f32.gmra.mxu0 %v606
    %v1711 = vpop.f32.mrf.mxu0
    %v1712 = vadd.f32 %v1689, %v1711
    %1713 = vmatmul.f32.gmra.mxu0 %v622
    %v1714 = vpop.f32.mrf.mxu0
    %v1715 = vadd.f32 %v1692, %v1714
    %1716 = vdwg.mxu0
    %1717 = vmatpush.msra.mxu0 %v949
    %1718 = vmatpush.msra.mxu0 %v947
    %1719 = vmatpush.msra.mxu0 %v945
    %1720 = vmatpush.msra.mxu0 %v943
    %1721 = vmatpush.msra.mxu0 %v941
    %1722 = vmatpush.msra.mxu0 %v939
    %1723 = vmatpush.msra.mxu0 %v937
    %1724 = vmatpush.msra.mxu0 %v935
    %1725 = vmatpush.msra.mxu0 %v933
    %1726 = vmatpush.msra.mxu0 %v931
    %1727 = vmatpush.msra.mxu0 %v929
    %1728 = vmatpush.msra.mxu0 %v927
    %1729 = vmatpush.msra.mxu0 %v925
    %1730 = vmatpush.msra.mxu0 %v923
    %1731 = vmatpush.msra.mxu0 %v921
    %1732 = vmatpush.msra.mxu0 %v919
    %1733 = vmatmul.f32.gmra.mxu0 %v607
    %v1734 = vpop.f32.mrf.mxu0
    %v1735 = vadd.f32 %v1712, %v1734
    %1736 = vmatmul.f32.gmra.mxu0 %v623
    %v1737 = vpop.f32.mrf.mxu0
    %v1738 = vadd.f32 %v1715, %v1737
    %1739 = vdwg.mxu0
    %1740 = vmatpush.msra.mxu0 %v981
    %1741 = vmatpush.msra.mxu0 %v979
    %1742 = vmatpush.msra.mxu0 %v977
    %1743 = vmatpush.msra.mxu0 %v975
    %1744 = vmatpush.msra.mxu0 %v973
    %1745 = vmatpush.msra.mxu0 %v971
    %1746 = vmatpush.msra.mxu0 %v969
    %1747 = vmatpush.msra.mxu0 %v967
    %1748 = vmatpush.msra.mxu0 %v965
    %1749 = vmatpush.msra.mxu0 %v963
    %1750 = vmatpush.msra.mxu0 %v961
    %1751 = vmatpush.msra.mxu0 %v959
    %1752 = vmatpush.msra.mxu0 %v957
    %1753 = vmatpush.msra.mxu0 %v955
    %1754 = vmatpush.msra.mxu0 %v953
    %1755 = vmatpush.msra.mxu0 %v951
    %1756 = vmatmul.f32.gmra.mxu0 %v608
    %v1757 = vpop.f32.mrf.mxu0
    %v1758 = vadd.f32 %v1735, %v1757
    %1759 = vmatmul.f32.gmra.mxu0 %v624
    %v1760 = vpop.f32.mrf.mxu0
    %v1761 = vadd.f32 %v1738, %v1760
    %1762 = vdwg.mxu0
    %1763 = vmatpush.msra.mxu0 %v1013
    %1764 = vmatpush.msra.mxu0 %v1011
    %1765 = vmatpush.msra.mxu0 %v1009
    %1766 = vmatpush.msra.mxu0 %v1007
    %1767 = vmatpush.msra.mxu0 %v1005
    %1768 = vmatpush.msra.mxu0 %v1003
    %1769 = vmatpush.msra.mxu0 %v1001
    %1770 = vmatpush.msra.mxu0 %v999
    %1771 = vmatpush.msra.mxu0 %v997
    %1772 = vmatpush.msra.mxu0 %v995
    %1773 = vmatpush.msra.mxu0 %v993
    %1774 = vmatpush.msra.mxu0 %v991
    %1775 = vmatpush.msra.mxu0 %v989
    %1776 = vmatpush.msra.mxu0 %v987
    %1777 = vmatpush.msra.mxu0 %v985
    %1778 = vmatpush.msra.mxu0 %v983
    %1779 = vmatmul.f32.gmra.mxu0 %v609
    %v1780 = vpop.f32.mrf.mxu0
    %v1781 = vadd.f32 %v1758, %v1780
    %1782 = vmatmul.f32.gmra.mxu0 %v625
    %v1783 = vpop.f32.mrf.mxu0
    %v1784 = vadd.f32 %v1761, %v1783
    %1785 = vdwg.mxu0
    %1786 = vmatpush.msra.mxu0 %v1045
    %1787 = vmatpush.msra.mxu0 %v1043
    %1788 = vmatpush.msra.mxu0 %v1041
    %1789 = vmatpush.msra.mxu0 %v1039
    %1790 = vmatpush.msra.mxu0 %v1037
    %1791 = vmatpush.msra.mxu0 %v1035
    %1792 = vmatpush.msra.mxu0 %v1033
    %1793 = vmatpush.msra.mxu0 %v1031
    %1794 = vmatpush.msra.mxu0 %v1029
    %1795 = vmatpush.msra.mxu0 %v1027
    %1796 = vmatpush.msra.mxu0 %v1025
    %1797 = vmatpush.msra.mxu0 %v1023
    %1798 = vmatpush.msra.mxu0 %v1021
    %1799 = vmatpush.msra.mxu0 %v1019
    %1800 = vmatpush.msra.mxu0 %v1017
    %1801 = vmatpush.msra.mxu0 %v1015
    %1802 = vmatmul.f32.gmra.mxu0 %v610
    %v1803 = vpop.f32.mrf.mxu0
    %v1804 = vadd.f32 %v1781, %v1803
    %1805 = vmatmul.f32.gmra.mxu0 %v626
    %v1806 = vpop.f32.mrf.mxu0
    %v1807 = vadd.f32 %v1784, %v1806
    %1808 = vdwg.mxu0
    %1809 = vmatpush.msra.mxu0 %v1077
    %1810 = vmatpush.msra.mxu0 %v1075
    %1811 = vmatpush.msra.mxu0 %v1073
    %1812 = vmatpush.msra.mxu0 %v1071
    %1813 = vmatpush.msra.mxu0 %v1069
    %1814 = vmatpush.msra.mxu0 %v1067
    %1815 = vmatpush.msra.mxu0 %v1065
    %1816 = vmatpush.msra.mxu0 %v1063
    %1817 = vmatpush.msra.mxu0 %v1061
    %1818 = vmatpush.msra.mxu0 %v1059
    %1819 = vmatpush.msra.mxu0 %v1057
    %1820 = vmatpush.msra.mxu0 %v1055
    %1821 = vmatpush.msra.mxu0 %v1053
    %1822 = vmatpush.msra.mxu0 %v1051
    %1823 = vmatpush.msra.mxu0 %v1049
    %1824 = vmatpush.msra.mxu0 %v1047
    %1825 = vmatmul.f32.gmra.mxu0 %v611
    %v1826 = vpop.f32.mrf.mxu0
    %v1827 = vadd.f32 %v1804, %v1826
    %1828 = vmatmul.f32.gmra.mxu0 %v627
    %v1829 = vpop.f32.mrf.mxu0
    %v1830 = vadd.f32 %v1807, %v1829
    %1831 = vdwg.mxu0
    %1832 = vmatpush.msra.mxu0 %v1109
    %1833 = vmatpush.msra.mxu0 %v1107
    %1834 = vmatpush.msra.mxu0 %v1105
    %1835 = vmatpush.msra.mxu0 %v1103
    %1836 = vmatpush.msra.mxu0 %v1101
    %1837 = vmatpush.msra.mxu0 %v1099
    %1838 = vmatpush.msra.mxu0 %v1097
    %1839 = vmatpush.msra.mxu0 %v1095
    %1840 = vmatpush.msra.mxu0 %v1093
    %1841 = vmatpush.msra.mxu0 %v1091
    %1842 = vmatpush.msra.mxu0 %v1089
    %1843 = vmatpush.msra.mxu0 %v1087
    %1844 = vmatpush.msra.mxu0 %v1085
    %1845 = vmatpush.msra.mxu0 %v1083
    %1846 = vmatpush.msra.mxu0 %v1081
    %1847 = vmatpush.msra.mxu0 %v1079
    %1848 = vmatmul.f32.gmra.mxu0 %v612
    %v1849 = vpop.f32.mrf.mxu0
    %v1850 = vadd.f32 %v1827, %v1849
    %1851 = vmatmul.f32.gmra.mxu0 %v628
    %v1852 = vpop.f32.mrf.mxu0
    %v1853 = vadd.f32 %v1830, %v1852
    %1854 = vdwg.mxu0
    %1855 = vmatpush.msra.mxu0 %v1141
    %1856 = vmatpush.msra.mxu0 %v1139
    %1857 = vmatpush.msra.mxu0 %v1137
    %1858 = vmatpush.msra.mxu0 %v1135
    %1859 = vmatpush.msra.mxu0 %v1133
    %1860 = vmatpush.msra.mxu0 %v1131
    %1861 = vmatpush.msra.mxu0 %v1129
    %1862 = vmatpush.msra.mxu0 %v1127
    %1863 = vmatpush.msra.mxu0 %v1125
    %1864 = vmatpush.msra.mxu0 %v1123
    %1865 = vmatpush.msra.mxu0 %v1121
    %1866 = vmatpush.msra.mxu0 %v1119
    %1867 = vmatpush.msra.mxu0 %v1117
    %1868 = vmatpush.msra.mxu0 %v1115
    %1869 = vmatpush.msra.mxu0 %v1113
    %1870 = vmatpush.msra.mxu0 %v1111
    %1871 = vmatmul.f32.gmra.mxu0 %v613
    %v1872 = vpop.f32.mrf.mxu0
    %v1873 = vadd.f32 %v1850, %v1872
    %1874 = vmatmul.f32.gmra.mxu0 %v629
    %v1875 = vpop.f32.mrf.mxu0
    %v1876 = vadd.f32 %v1853, %v1875
    %1877 = vdwg.mxu0
    %1878 = vadd.xlane.f32.xlu0 %v1505
    %v1879 = vpop.xlane.xlu0 %1878
    %1880 = vadd.xlane.f32.xlu0 %v1508
    %v1881 = vpop.xlane.xlu0 %1880
    %v1882 = vmul.f32 %v1505, %v1505
    %v1883 = vmul.f32 %v1508, %v1508
    %1884 = vadd.xlane.f32.xlu0 %v1882
    %v1885 = vpop.xlane.xlu0 %1884
    %1886 = vadd.xlane.f32.xlu0 %v1883
    %v1887 = vpop.xlane.xlu0 %1886
    %v1888 = vmul.f32 %v1879, 0.0078125
    %v1889 = vmul.f32 %v1881, 0.0078125
    %v1890 = vmul.f32 %v1885, 0.0078125
    %v1891 = vmul.f32 %v1887, 0.0078125
    %v1892 = vmul.f32 %v1888, %v1888
    %v1893 = vmul.f32 %v1889, %v1889
    %v1894 = vsub.f32 %v1890, %v1892
    %v1895 = vsub.f32 %v1891, %v1893
    %v1896 = vadd.f32 %v1894, 1e-05
    %v1897 = vadd.f32 %v1895, 1e-05
    %v1898 = vrsqrt.pop %v1896
    %v1899 = vmul.f32 %v1898, %v1896
    %v1900 = vmul.f32 %v1899, %v1898
    %v1901 = vmul.f32 0.5, %v1900
    %v1902 = vsub.f32 1.5, %v1901
    %v1903 = vmul.f32 %v1898, %v1902
    %vm1904 = vweird.f32 %v1896
    %vm1905 = vweird.f32 %v1898
    %vm1906 = vmor %vm1904, %vm1905
    %v1907 = vsel %vm1906, %v1898, %v1903
    %v1908 = vrsqrt.pop %v1897
    %v1909 = vmul.f32 %v1908, %v1897
    %v1910 = vmul.f32 %v1909, %v1908
    %v1911 = vmul.f32 0.5, %v1910
    %v1912 = vsub.f32 1.5, %v1911
    %v1913 = vmul.f32 %v1908, %v1912
    %vm1914 = vweird.f32 %v1897
    %vm1915 = vweird.f32 %v1908
    %vm1916 = vmor %vm1914, %vm1915
    %v1917 = vsel %vm1916, %v1908, %v1913
    %v1918 = vsub.f32 %v1505, %v1888
    %v1919 = vsub.f32 %v1508, %v1889
    %v1920 = vmul.f32 %v1918, %v1907
    %v1921 = vmul.f32 %v1919, %v1917
    %1922 = vadd.xlane.f32.xlu0 %v1873
    %v1923 = vpop.xlane.xlu0 %1922
    %1924 = vadd.xlane.f32.xlu0 %v1876
    %v1925 = vpop.xlane.xlu0 %1924
    %v1926 = vmul.f32 %v1873, %v1873
    %v1927 = vmul.f32 %v1876, %v1876
    %1928 = vadd.xlane.f32.xlu0 %v1926
    %v1929 = vpop.xlane.xlu0 %1928
    %1930 = vadd.xlane.f32.xlu0 %v1927
    %v1931 = vpop.xlane.xlu0 %1930
    %v1932 = vmul.f32 %v1923, 0.0078125
    %v1933 = vmul.f32 %v1925, 0.0078125
    %v1934 = vmul.f32 %v1929, 0.0078125
    %v1935 = vmul.f32 %v1931, 0.0078125
    %v1936 = vmul.f32 %v1932, %v1932
    %v1937 = vmul.f32 %v1933, %v1933
    %v1938 = vsub.f32 %v1934, %v1936
    %v1939 = vsub.f32 %v1935, %v1937
    %v1940 = vadd.f32 %v1938, 1e-05
    %v1941 = vadd.f32 %v1939, 1e-05
    %v1942 = vrsqrt.pop %v1940
    %v1943 = vmul.f32 %v1942, %v1940
    %v1944 = vmul.f32 %v1943, %v1942
    %v1945 = vmul.f32 0.5, %v1944
    %v1946 = vsub.f32 1.5, %v1945
    %v1947 = vmul.f32 %v1942, %v1946
    %vm1948 = vweird.f32 %v1940
    %vm1949 = vweird.f32 %v1942
    %vm1950 = vmor %vm1948, %vm1949
    %v1951 = vsel %vm1950, %v1942, %v1947
    %v1952 = vrsqrt.pop %v1941
    %v1953 = vmul.f32 %v1952, %v1941
    %v1954 = vmul.f32 %v1953, %v1952
    %v1955 = vmul.f32 0.5, %v1954
    %v1956 = vsub.f32 1.5, %v1955
    %v1957 = vmul.f32 %v1952, %v1956
    %vm1958 = vweird.f32 %v1941
    %vm1959 = vweird.f32 %v1952
    %vm1960 = vmor %vm1958, %vm1959
    %v1961 = vsel %vm1960, %v1952, %v1957
    %v1962 = vsub.f32 %v1873, %v1932
    %v1963 = vsub.f32 %v1876, %v1933
    %v1964 = vmul.f32 %v1962, %v1951
    %v1965 = vmul.f32 %v1963, %v1961
    %v1966 = vmax.f32 %v1920, 0.0
    %v1967 = vmax.f32 %v1964, 0.0
    %v1968 = vmax.f32 %v1921, 0.0
    %v1969 = vmax.f32 %v1965, 0.0
    %v1970 = vld [vmem:[%s5] sm:$0xff]
    %v1971 = vld [vmem:[%s5 + $0x8] sm:$0xff]
    %v1972 = vld [vmem:[%s5 + $0x10] sm:$0xff]
    %v1973 = vld [vmem:[%s5 + $0x18] sm:$0xff]
    %v1974 = vld [vmem:[%s5 + $0x20] sm:$0xff]
    %v1975 = vld [vmem:[%s5 + $0x28] sm:$0xff]
    %v1976 = vld [vmem:[%s5 + $0x30] sm:$0xff]
    %v1977 = vld [vmem:[%s5 + $0x38] sm:$0xff]
    %v1978 = vld [vmem:[%s5 + $0x40] sm:$0xff]
    %v1979 = vld [vmem:[%s5 + $0x48] sm:$0xff]
    %v1980 = vld [vmem:[%s5 + $0x50] sm:$0xff]
    %v1981 = vld [vmem:[%s5 + $0x58] sm:$0xff]
    %v1982 = vld [vmem:[%s5 + $0x60] sm:$0xff]
    %v1983 = vld [vmem:[%s5 + $0x68] sm:$0xff]
    %v1984 = vld [vmem:[%s5 + $0x70] sm:$0xff]
    %v1985 = vld [vmem:[%s5 + $0x78] sm:$0xff]
    %v1986 = vld [vmem:[%s5 + $0x80] sm:$0xff]
    %v1987 = vld [vmem:[%s5 + $0x88] sm:$0xff]
    %v1988 = vld [vmem:[%s5 + $0x90] sm:$0xff]
    %v1989 = vld [vmem:[%s5 + $0x98] sm:$0xff]
    %v1990 = vld [vmem:[%s5 + $0xa0] sm:$0xff]
    %v1991 = vld [vmem:[%s5 + $0xa8] sm:$0xff]
    %v1992 = vld [vmem:[%s5 + $0xb0] sm:$0xff]
    %v1993 = vld [vmem:[%s5 + $0xb8] sm:$0xff]
    %v1994 = vld [vmem:[%s5 + $0xc0] sm:$0xff]
    %v1995 = vld [vmem:[%s5 + $0xc8] sm:$0xff]
    %v1996 = vld [vmem:[%s5 + $0xd0] sm:$0xff]
    %v1997 = vld [vmem:[%s5 + $0xd8] sm:$0xff]
    %v1998 = vld [vmem:[%s5 + $0xe0] sm:$0xff]
    %v1999 = vld [vmem:[%s5 + $0xe8] sm:$0xff]
    %v2000 = vld [vmem:[%s5 + $0xf0] sm:$0xff]
    %v2001 = vld [vmem:[%s5 + $0xf8] sm:$0xff]
    %v2002 = vld [vmem:[#allocation11] sm:$0x1]
    %v2004 = vperm.slane %v2002, 0
    %2006 = vmatpush.msra.mxu0 %v1985
    %2007 = vmatpush.msra.mxu0 %v1984
    %2008 = vmatpush.msra.mxu0 %v1983
    %2009 = vmatpush.msra.mxu0 %v1982
    %2010 = vmatpush.msra.mxu0 %v1981
    %2011 = vmatpush.msra.mxu0 %v1980
    %2012 = vmatpush.msra.mxu0 %v1979
    %2013 = vmatpush.msra.mxu0 %v1978
    %2014 = vmatpush.msra.mxu0 %v1977
    %2015 = vmatpush.msra.mxu0 %v1976
    %2016 = vmatpush.msra.mxu0 %v1975
    %2017 = vmatpush.msra.mxu0 %v1974
    %2018 = vmatpush.msra.mxu0 %v1973
    %2019 = vmatpush.msra.mxu0 %v1972
    %2020 = vmatpush.msra.mxu0 %v1971
    %2021 = vmatpush.msra.mxu0 %v1970
    %2022 = vmatmul.f32.gmra.mxu0 %v1966
    %v2023 = vpop.f32.mrf.mxu0
    %v2024 = vadd.f32 %v2004, %v2023
    %2025 = vmatmul.f32.gmra.mxu0 %v1968
    %v2026 = vpop.f32.mrf.mxu0
    %v2027 = vadd.f32 %v2004, %v2026
    %2028 = vdwg.mxu0
    %2029 = vmatpush.msra.mxu0 %v2001
    %2030 = vmatpush.msra.mxu0 %v2000
    %2031 = vmatpush.msra.mxu0 %v1999
    %2032 = vmatpush.msra.mxu0 %v1998
    %2033 = vmatpush.msra.mxu0 %v1997
    %2034 = vmatpush.msra.mxu0 %v1996
    %2035 = vmatpush.msra.mxu0 %v1995
    %2036 = vmatpush.msra.mxu0 %v1994
    %2037 = vmatpush.msra.mxu0 %v1993
    %2038 = vmatpush.msra.mxu0 %v1992
    %2039 = vmatpush.msra.mxu0 %v1991
    %2040 = vmatpush.msra.mxu0 %v1990
    %2041 = vmatpush.msra.mxu0 %v1989
    %2042 = vmatpush.msra.mxu0 %v1988
    %2043 = vmatpush.msra.mxu0 %v1987
    %2044 = vmatpush.msra.mxu0 %v1986
    %2045 = vmatmul.f32.gmra.mxu0 %v1967
    %v2046 = vpop.f32.mrf.mxu0
    %v2047 = vadd.f32 %v2024, %v2046
    %2048 = vmatmul.f32.gmra.mxu0 %v1969
    %v2049 = vpop.f32.mrf.mxu0
    %v2050 = vadd.f32 %v2027, %v2049
    %2051 = vdwg.mxu0
    %v2052 = vadd.f32 %v117, %v2047
    %v2053 = vadd.f32 %v118, %v2050
    %2054 = vst.msk [vmem:[#allocation13] sm:$0xff] %vm223, %v2052
    %2055 = vst.msk [vmem:[#allocation13 + $0x8] sm:$0xff] %vm223, %v2053
    // Predicated region
    $region54: #{tpu_custom_call.1} parent=1 // pred_check
      _
    $region55: #{tpu_custom_call.1} parent=1 // pred_check_branch
      %2057 = sbr.rel (0) target = $region57
    $region56: #{tpu_custom_call.1} parent=1 // pred_region
      %2059 = vsyncadd [#allocation4], 0
      %s2060 = sshll.u32 [#allocation13], 4
      %s2061 = int_to_ptr.vmem [resolvable:$true] %s2060
      %s2062 = sshll.u32 %s7, 4
      %s2063 = int_to_ptr.hbm [resolvable:$true] %s2062
      %2068 = dma.vmem_to_hbm [thread:$0]  %s2061, 256, %s2063, [#allocation4], 128, 128, 8
    $region57: #{tpu_custom_call.1} parent=1 // pred_fallthru
      _
    // Predicated region
    $region58: #{tpu_custom_call.1} parent=1 // pred_check
      _
    $region59: #{tpu_custom_call.1} parent=1 // pred_check_branch
      %2070 = sbr.rel (0) target = $region61
    $region60: #{tpu_custom_call.1} parent=1 // pred_region
      %2072 = dma.done [#allocation4], 256
    $region61: #{tpu_custom_call.1} parent=1 // pred_fallthru
      _
    %2073 = vsyncpa [#allocation3], 1
    %2074 = vsyncpa [#allocation6], 1
    %2075 = vsyncpa [#allocation9], 1
    %2076 = vsyncpa [#allocation12], 1
    %2077 = vsyncpa [#allocation4], 1

</llo_original>
